<compile_context>
chip_gen: v5e
topology: v5e:2x2
jax: 0.10.0
libtpu: 0.0.40
codegen_flags: <defaults>
</compile_context>

<pallas_src>
import math
import numpy as np
import jax
import jax.numpy as jnp
from jax import lax
from jax.experimental import pallas as pl
from jax.experimental.pallas import tpu as pltpu

# ----------------------------- config (small, consistent with the module) -----------------
B, S, D = 2, 8, 64
N_HEADS = 4
N_KV_HEADS = 2
HEAD_DIM = D // N_HEADS                 # 16
N_REP = N_HEADS // N_KV_HEADS           # 2
# hidden_dim = multiple_of * ceil(int(2*4*dim/3) / multiple_of), multiple_of=32 -> 192
HIDDEN = 192
EPS = 1e-5
ROPE_THETA = 10000.0

T = B * S                               # 16 tokens processed in one shot
QW = N_HEADS * HEAD_DIM                 # 64
KVW = N_KV_HEADS * HEAD_DIM             # 32
QKV_W = QW + 2 * KVW                    # 128 (exactly one MXU tile width)


# ----------------------------- in-kernel helpers ------------------------------------------
def _rmsnorm(x, w):
    # w * (x * rsqrt(mean(x^2, -1) + eps))
    return w * (x * lax.rsqrt(jnp.mean(x * x, axis=-1, keepdims=True) + EPS))


# ----------------------------- the kernel (single invocation, whole problem) ---------------
def block_kernel(x_ref, cos_ref, sine_ref, sino_ref, mask_ref,
                 wqkv_ref, wo_ref, anw_ref, fnw_ref, w13_ref, w2_ref,
                 out_ref):
    x = x_ref[...]                                              # (T, D)

    # ---- attention branch ----
    xn = _rmsnorm(x, anw_ref[...])                              # (T, D)
    # fused Q|K|V projection: one 128-lane-wide MXU push
    qkv = jnp.dot(xn, wqkv_ref[...], preferred_element_type=jnp.float32)   # (T, 128)

    # fused RoPE on the whole slab: out = x*cos + x[j+1]*sin_even + x[j-1]*sin_odd
    # (V lanes have cos=1, sin_even=sin_odd=0 -> identity; sign/parity baked into tables)
    prev = pltpu.roll(qkv, shift=1, axis=1)                     # prev[j] = qkv[j-1]
    nxt = pltpu.roll(qkv, shift=QKV_W - 1, axis=1)              # nxt[j]  = qkv[j+1]
    qkv = qkv * cos_ref[...] + nxt * sine_ref[...] + prev * sino_ref[...]

    q = qkv[:, :QW]                                             # (T, 64)
    k = qkv[:, QW:QW + KVW]                                     # (T, 32)
    v = qkv[:, QW + KVW:]                                       # (T, 32)

    scale = 1.0 / math.sqrt(HEAD_DIM)
    mask = mask_ref[...]                                        # (T, T) additive, 0 / -inf
    wo = wo_ref[...]                                            # (QW, D)

    # per-head attention over both batch elements at once (block-diag causal mask);
    # head outputs are folded straight into the residual via wo row-slices (no concat).
    h_res = x
    for h in range(N_HEADS):                                    # static unroll over 4 heads
        kvh = h // N_REP                                        # repeat_kv (repeat_interleave)
        qh = q[:, h * HEAD_DIM:(h + 1) * HEAD_DIM]              # (T, hd)
        kh = k[:, kvh * HEAD_DIM:(kvh + 1) * HEAD_DIM]          # (T, hd)
        vh = v[:, kvh * HEAD_DIM:(kvh + 1) * HEAD_DIM]          # (T, hd)
        s = lax.dot_general(qh, kh, (((1,), (1,)), ((), ())),
                            preferred_element_type=jnp.float32) * scale + mask   # (T, T)
        m = jnp.max(s, axis=-1, keepdims=True)
        p = jnp.exp(s - m)
        p = p * pl.reciprocal(jnp.sum(p, axis=-1, keepdims=True), approx=False)
        ho = jnp.dot(p, vh, preferred_element_type=jnp.float32)                  # (T, hd)
        h_res = h_res + jnp.dot(ho, wo[h * HEAD_DIM:(h + 1) * HEAD_DIM, :],
                                preferred_element_type=jnp.float32)

    # ---- feed-forward branch (SwiGLU), fused W1|W3 ----
    hn = _rmsnorm(h_res, fnw_ref[...])
    gu = jnp.dot(hn, w13_ref[...], preferred_element_type=jnp.float32)           # (T, 384)
    g = gu[:, :HIDDEN]
    u = gu[:, HIDDEN:]
    gate = g * pl.reciprocal(1.0 + jnp.exp(-g), approx=False)                    # silu
    ffn = jnp.dot(gate * u, w2_ref[...], preferred_element_type=jnp.float32)

    out_ref[...] = h_res + ffn


# ----------------------------- wrapper --------------------------------------------------
def micro_llm_block(x, params, cos, sin):
    """x: (B, S, D) f32; cos/sin: (S, HEAD_DIM//2) f32 (pos_cis); params: dict of weights."""
    # --- RoPE tables for the fused QKV slab, parity sign folded in (built outside kernel) ---
    cos_il = jnp.repeat(cos, 2, axis=-1)                        # (S, hd), pair-interleaved
    sin_il = jnp.repeat(sin, 2, axis=-1)
    parity = (jnp.arange(HEAD_DIM) % 2).astype(jnp.float32)     # 0 on even lanes, 1 on odd
    sin_e_h = -sin_il * (1.0 - parity)                          # -sin on even, 0 on odd
    sin_o_h = sin_il * parity                                   # +sin on odd, 0 on even

    def slab(head_tab, v_fill):
        return jnp.concatenate(
            [jnp.tile(head_tab, (1, N_HEADS)),                  # Q lanes
             jnp.tile(head_tab, (1, N_KV_HEADS)),               # K lanes
             jnp.full((S, KVW), v_fill, jnp.float32)],          # V lanes (identity)
            axis=-1)

    cos_f = jnp.tile(slab(cos_il, 1.0), (B, 1))                 # (T, 128)
    sin_e = jnp.tile(slab(sin_e_h, 0.0), (B, 1))
    sin_o = jnp.tile(slab(sin_o_h, 0.0), (B, 1))

    # --- block-diagonal causal additive mask over the flattened (B*S) token axis ---
    tok = jnp.arange(T)
    bi, pos = tok // S, tok % S
    allowed = (bi[:, None] == bi[None, :]) & (pos[None, :] <= pos[:, None])
    mask = jnp.where(allowed, 0.0, -jnp.inf).astype(jnp.float32)

    # --- fused weights ---
    wqkv = jnp.concatenate([params["wq"], params["wk"], params["wv"]], axis=1)   # (D, 128)
    w13 = jnp.concatenate([params["w1"], params["w3"]], axis=1)                  # (D, 384)

    x2d = x.reshape(T, D)
    out2d = pl.pallas_call(
        block_kernel,
        out_shape=jax.ShapeDtypeStruct((T, D), jnp.float32),
    )(x2d, cos_f, sin_e, sin_o, mask,
      wqkv, params["wo"], params["attn_norm_w"], params["ffn_norm_w"],
      w13, params["w2"])
    return out2d.reshape(B, S, D)


# ----------------------------- pure-JAX reference (for correctness check) -----------------
def _ref_rms(x, w):
    return w * (x * lax.rsqrt(jnp.mean(x * x, axis=-1, keepdims=True) + EPS))


def _ref_rope(x, cos, sin):
    # x: (B, S, H, hd); cos/sin: (S, hd//2); interleaved-pair (complex) rotation
    xr = x.reshape(*x.shape[:-1], HEAD_DIM // 2, 2)
    xe, xo = xr[..., 0], xr[..., 1]
    c = cos[None, :, None, :]
    s_ = sin[None, :, None, :]
    oe = xe * c - xo * s_
    oo = xe * s_ + xo * c
    return jnp.stack([oe, oo], axis=-1).reshape(x.shape)


def reference_block(x, params, cos, sin):
    anw = params["attn_norm_w"][0]
    fnw = params["ffn_norm_w"][0]
    xn = _ref_rms(x, anw)
    q = xn @ params["wq"]
    k = xn @ params["wk"]
    v = xn @ params["wv"]
    q = q.reshape(B, S, N_HEADS, HEAD_DIM)
    k = k.reshape(B, S, N_KV_HEADS, HEAD_DIM)
    v = v.reshape(B, S, N_KV_HEADS, HEAD_DIM)
    q = _ref_rope(q, cos, sin)
    k = _ref_rope(k, cos, sin)
    k = jnp.repeat(k, N_REP, axis=2)
    v = jnp.repeat(v, N_REP, axis=2)
    qT = q.transpose(0, 2, 1, 3)
    kT = k.transpose(0, 2, 1, 3)
    vT = v.transpose(0, 2, 1, 3)
    scores = (qT @ kT.transpose(0, 1, 3, 2)) / math.sqrt(HEAD_DIM)
    mask = jnp.triu(jnp.full((S, S), -jnp.inf, dtype=jnp.float32), k=1)
    scores = scores + mask[None, None]
    p = jax.nn.softmax(scores.astype(jnp.float32), axis=-1)
    o = (p @ vT).transpose(0, 2, 1, 3).reshape(B, S, D)
    h = x + o @ params["wo"]
    hn = _ref_rms(h, fnw)
    ffn = (jax.nn.silu(hn @ params["w1"]) * (hn @ params["w3"])) @ params["w2"]
    return h + ffn


# ----------------------------- main --------------------------------------------------------
if __name__ == "__main__":
    key = jax.random.PRNGKey(0)
    ks = jax.random.split(key, 12)

    def lin(k, fan_in, shape):
        return (jax.random.normal(k, shape, jnp.float32) / math.sqrt(fan_in)).astype(jnp.float32)

    params = {
        "wq": lin(ks[0], D, (D, N_HEADS * HEAD_DIM)),
        "wk": lin(ks[1], D, (D, N_KV_HEADS * HEAD_DIM)),
        "wv": lin(ks[2], D, (D, N_KV_HEADS * HEAD_DIM)),
        "wo": lin(ks[3], N_HEADS * HEAD_DIM, (N_HEADS * HEAD_DIM, D)),
        "w1": lin(ks[4], D, (D, HIDDEN)),
        "w2": lin(ks[5], HIDDEN, (HIDDEN, D)),
        "w3": lin(ks[6], D, (D, HIDDEN)),
        # RMSNorm weights (ones + small deterministic perturbation), kept 2D for VMEM layout
        "attn_norm_w": (1.0 + 0.05 * jax.random.normal(ks[7], (1, D), jnp.float32)),
        "ffn_norm_w": (1.0 + 0.05 * jax.random.normal(ks[8], (1, D), jnp.float32)),
    }

    # pos_cis (as cos/sin): shape (S, HEAD_DIM//2)
    freqs = 1.0 / (ROPE_THETA ** (jnp.arange(0, HEAD_DIM, 2, dtype=jnp.float32) / HEAD_DIM))
    angles = jnp.arange(S, dtype=jnp.float32)[:, None] * freqs[None, :]
    cos, sin = jnp.cos(angles), jnp.sin(angles)

    x = jax.random.normal(ks[9], (B, S, D), jnp.float32)

    out = micro_llm_block(x, params, cos, sin)
    out = jax.block_until_ready(out)

    ref = jax.block_until_ready(reference_block(x, params, cos, sin))
    np.testing.assert_allclose(np.asarray(out), np.asarray(ref), rtol=2e-4, atol=2e-4)

    print("KERNEL_OK")
</pallas_src>

<mosaic_0001>
module attributes {stable_mosaic.version = 11 : i64} {
  func.func @block_kernel(%arg0: memref<16x64xf32, #tpu.memory_space<vmem>>, %arg1: memref<16x128xf32, #tpu.memory_space<vmem>>, %arg2: memref<16x128xf32, #tpu.memory_space<vmem>>, %arg3: memref<16x128xf32, #tpu.memory_space<vmem>>, %arg4: memref<16x16xf32, #tpu.memory_space<vmem>>, %arg5: memref<64x128xf32, #tpu.memory_space<vmem>>, %arg6: memref<64x64xf32, #tpu.memory_space<vmem>>, %arg7: memref<1x64xf32, #tpu.memory_space<vmem>>, %arg8: memref<1x64xf32, #tpu.memory_space<vmem>>, %arg9: memref<64x384xf32, #tpu.memory_space<vmem>>, %arg10: memref<192x64xf32, #tpu.memory_space<vmem>>, %arg11: memref<16x64xf32, #tpu.memory_space<vmem>>) attributes {dimension_semantics = [], scalar_prefetch = 0 : i64, scratch_operands = 0 : i64, tpu.core_type = #tpu.core_type<tc>} {
    %c0 = arith.constant 0 : index
    %c0_0 = arith.constant 0 : index
    %0 = vector.load %arg0[%c0, %c0_0] : memref<16x64xf32, #tpu.memory_space<vmem>>, vector<16x64xf32>
    %c0_1 = arith.constant 0 : index
    %c0_2 = arith.constant 0 : index
    %1 = vector.load %arg7[%c0_1, %c0_2] : memref<1x64xf32, #tpu.memory_space<vmem>>, vector<1x64xf32>
    %2 = arith.mulf %0, %0 : vector<16x64xf32>
    %cst = arith.constant dense<0.000000e+00> : vector<16xf32>
    %3 = vector.multi_reduction <add>, %2, %cst [1] : vector<16x64xf32> to vector<16xf32>
    %4 = vector.shape_cast %3 : vector<16xf32> to vector<16x1xf32>
    %cst_3 = arith.constant 6.400000e+01 : f32
    %5 = vector.broadcast %cst_3 : f32 to vector<16x1xf32>
    %6 = arith.divf %4, %5 : vector<16x1xf32>
    %cst_4 = arith.constant 9.99999974E-6 : f32
    %7 = vector.broadcast %cst_4 : f32 to vector<16x1xf32>
    %8 = arith.addf %6, %7 : vector<16x1xf32>
    %9 = math.rsqrt %8 : vector<16x1xf32>
    %10 = vector.broadcast %9 : vector<16x1xf32> to vector<16x64xf32>
    %11 = arith.mulf %0, %10 : vector<16x64xf32>
    %12 = vector.broadcast %1 : vector<1x64xf32> to vector<16x64xf32>
    %13 = arith.mulf %12, %11 : vector<16x64xf32>
    %c0_5 = arith.constant 0 : index
    %c0_6 = arith.constant 0 : index
    %14 = vector.load %arg5[%c0_5, %c0_6] : memref<64x128xf32, #tpu.memory_space<vmem>>, vector<64x128xf32>
    %cst_7 = arith.constant dense<0.000000e+00> : vector<16x128xf32>
    %15 = tpu.matmul %13, %14, %cst_7 {dimension_numbers = #tpu.dot_dimension_numbers<[1], [0], [0], [1], [0, 0, 1, 1], [], []>} : vector<16x64xf32>, vector<64x128xf32>, vector<16x128xf32> -> vector<16x128xf32>
    %c1_i32 = arith.constant 1 : i32
    %16 = tpu.dynamic_rotate %15 by %c1_i32 dim 1 : vector<16x128xf32>, i32 -> vector<16x128xf32>
    %c127_i32 = arith.constant 127 : i32
    %17 = tpu.dynamic_rotate %15 by %c127_i32 dim 1 : vector<16x128xf32>, i32 -> vector<16x128xf32>
    %c0_8 = arith.constant 0 : index
    %c0_9 = arith.constant 0 : index
    %18 = vector.load %arg1[%c0_8, %c0_9] : memref<16x128xf32, #tpu.memory_space<vmem>>, vector<16x128xf32>
    %19 = arith.mulf %15, %18 : vector<16x128xf32>
    %c0_10 = arith.constant 0 : index
    %c0_11 = arith.constant 0 : index
    %20 = vector.load %arg2[%c0_10, %c0_11] : memref<16x128xf32, #tpu.memory_space<vmem>>, vector<16x128xf32>
    %21 = arith.mulf %17, %20 : vector<16x128xf32>
    %22 = arith.addf %19, %21 : vector<16x128xf32>
    %c0_12 = arith.constant 0 : index
    %c0_13 = arith.constant 0 : index
    %23 = vector.load %arg3[%c0_12, %c0_13] : memref<16x128xf32, #tpu.memory_space<vmem>>, vector<16x128xf32>
    %24 = arith.mulf %16, %23 : vector<16x128xf32>
    %25 = arith.addf %22, %24 : vector<16x128xf32>
    %26 = vector.extract_strided_slice %25 {offsets = [0, 0], sizes = [16, 64], strides = [1, 1]} : vector<16x128xf32> to vector<16x64xf32>
    %27 = vector.extract_strided_slice %25 {offsets = [0, 64], sizes = [16, 32], strides = [1, 1]} : vector<16x128xf32> to vector<16x32xf32>
    %28 = vector.extract_strided_slice %25 {offsets = [0, 96], sizes = [16, 32], strides = [1, 1]} : vector<16x128xf32> to vector<16x32xf32>
    %c0_14 = arith.constant 0 : index
    %c0_15 = arith.constant 0 : index
    %29 = vector.load %arg4[%c0_14, %c0_15] : memref<16x16xf32, #tpu.memory_space<vmem>>, vector<16x16xf32>
    %c0_16 = arith.constant 0 : index
    %c0_17 = arith.constant 0 : index
    %30 = vector.load %arg6[%c0_16, %c0_17] : memref<64x64xf32, #tpu.memory_space<vmem>>, vector<64x64xf32>
    %31 = vector.extract_strided_slice %26 {offsets = [0, 0], sizes = [16, 16], strides = [1, 1]} : vector<16x64xf32> to vector<16x16xf32>
    %32 = vector.extract_strided_slice %27 {offsets = [0, 0], sizes = [16, 16], strides = [1, 1]} : vector<16x32xf32> to vector<16x16xf32>
    %33 = vector.extract_strided_slice %28 {offsets = [0, 0], sizes = [16, 16], strides = [1, 1]} : vector<16x32xf32> to vector<16x16xf32>
    %cst_18 = arith.constant dense<0.000000e+00> : vector<16x16xf32>
    %34 = tpu.matmul %31, %32, %cst_18 {dimension_numbers = #tpu.dot_dimension_numbers<[1], [1], [0], [0], [0, 0, 1, 0], [], []>} : vector<16x16xf32>, vector<16x16xf32>, vector<16x16xf32> -> vector<16x16xf32>
    %cst_19 = arith.constant 2.500000e-01 : f32
    %35 = vector.broadcast %cst_19 : f32 to vector<16x16xf32>
    %36 = arith.mulf %34, %35 : vector<16x16xf32>
    %37 = arith.addf %36, %29 : vector<16x16xf32>
    %cst_20 = arith.constant dense<0xFF800000> : vector<16xf32>
    %38 = vector.multi_reduction <maximumf>, %37, %cst_20 [1] : vector<16x16xf32> to vector<16xf32>
    %39 = vector.shape_cast %38 : vector<16xf32> to vector<16x1xf32>
    %40 = vector.broadcast %39 : vector<16x1xf32> to vector<16x16xf32>
    %41 = arith.subf %37, %40 : vector<16x16xf32>
    %42 = math.exp %41 : vector<16x16xf32>
    %cst_21 = arith.constant dense<0.000000e+00> : vector<16xf32>
    %43 = vector.multi_reduction <add>, %42, %cst_21 [1] : vector<16x16xf32> to vector<16xf32>
    %44 = vector.shape_cast %43 : vector<16xf32> to vector<16x1xf32>
    %45 = tpu.reciprocal %44 : vector<16x1xf32> -> vector<16x1xf32>
    %46 = vector.broadcast %45 : vector<16x1xf32> to vector<16x16xf32>
    %47 = arith.mulf %42, %46 : vector<16x16xf32>
    %cst_22 = arith.constant dense<0.000000e+00> : vector<16x16xf32>
    %48 = tpu.matmul %47, %33, %cst_22 {dimension_numbers = #tpu.dot_dimension_numbers<[1], [0], [0], [1], [0, 0, 1, 1], [], []>} : vector<16x16xf32>, vector<16x16xf32>, vector<16x16xf32> -> vector<16x16xf32>
    %49 = vector.extract_strided_slice %30 {offsets = [0, 0], sizes = [16, 64], strides = [1, 1]} : vector<64x64xf32> to vector<16x64xf32>
    %cst_23 = arith.constant dense<0.000000e+00> : vector<16x64xf32>
    %50 = tpu.matmul %48, %49, %cst_23 {dimension_numbers = #tpu.dot_dimension_numbers<[1], [0], [0], [1], [0, 0, 1, 1], [], []>} : vector<16x16xf32>, vector<16x64xf32>, vector<16x64xf32> -> vector<16x64xf32>
    %51 = arith.addf %0, %50 : vector<16x64xf32>
    %52 = vector.extract_strided_slice %26 {offsets = [0, 16], sizes = [16, 16], strides = [1, 1]} : vector<16x64xf32> to vector<16x16xf32>
    %53 = vector.extract_strided_slice %27 {offsets = [0, 0], sizes = [16, 16], strides = [1, 1]} : vector<16x32xf32> to vector<16x16xf32>
    %54 = vector.extract_strided_slice %28 {offsets = [0, 0], sizes = [16, 16], strides = [1, 1]} : vector<16x32xf32> to vector<16x16xf32>
    %cst_24 = arith.constant dense<0.000000e+00> : vector<16x16xf32>
    %55 = tpu.matmul %52, %53, %cst_24 {dimension_numbers = #tpu.dot_dimension_numbers<[1], [1], [0], [0], [0, 0, 1, 0], [], []>} : vector<16x16xf32>, vector<16x16xf32>, vector<16x16xf32> -> vector<16x16xf32>
    %cst_25 = arith.constant 2.500000e-01 : f32
    %56 = vector.broadcast %cst_25 : f32 to vector<16x16xf32>
    %57 = arith.mulf %55, %56 : vector<16x16xf32>
    %58 = arith.addf %57, %29 : vector<16x16xf32>
    %cst_26 = arith.constant dense<0xFF800000> : vector<16xf32>
    %59 = vector.multi_reduction <maximumf>, %58, %cst_26 [1] : vector<16x16xf32> to vector<16xf32>
    %60 = vector.shape_cast %59 : vector<16xf32> to vector<16x1xf32>
    %61 = vector.broadcast %60 : vector<16x1xf32> to vector<16x16xf32>
    %62 = arith.subf %58, %61 : vector<16x16xf32>
    %63 = math.exp %62 : vector<16x16xf32>
    %cst_27 = arith.constant dense<0.000000e+00> : vector<16xf32>
    %64 = vector.multi_reduction <add>, %63, %cst_27 [1] : vector<16x16xf32> to vector<16xf32>
    %65 = vector.shape_cast %64 : vector<16xf32> to vector<16x1xf32>
    %66 = tpu.reciprocal %65 : vector<16x1xf32> -> vector<16x1xf32>
    %67 = vector.broadcast %66 : vector<16x1xf32> to vector<16x16xf32>
    %68 = arith.mulf %63, %67 : vector<16x16xf32>
    %cst_28 = arith.constant dense<0.000000e+00> : vector<16x16xf32>
    %69 = tpu.matmul %68, %54, %cst_28 {dimension_numbers = #tpu.dot_dimension_numbers<[1], [0], [0], [1], [0, 0, 1, 1], [], []>} : vector<16x16xf32>, vector<16x16xf32>, vector<16x16xf32> -> vector<16x16xf32>
    %70 = vector.extract_strided_slice %30 {offsets = [16, 0], sizes = [16, 64], strides = [1, 1]} : vector<64x64xf32> to vector<16x64xf32>
    %cst_29 = arith.constant dense<0.000000e+00> : vector<16x64xf32>
    %71 = tpu.matmul %69, %70, %cst_29 {dimension_numbers = #tpu.dot_dimension_numbers<[1], [0], [0], [1], [0, 0, 1, 1], [], []>} : vector<16x16xf32>, vector<16x64xf32>, vector<16x64xf32> -> vector<16x64xf32>
    %72 = arith.addf %51, %71 : vector<16x64xf32>
    %73 = vector.extract_strided_slice %26 {offsets = [0, 32], sizes = [16, 16], strides = [1, 1]} : vector<16x64xf32> to vector<16x16xf32>
    %74 = vector.extract_strided_slice %27 {offsets = [0, 16], sizes = [16, 16], strides = [1, 1]} : vector<16x32xf32> to vector<16x16xf32>
    %75 = vector.extract_strided_slice %28 {offsets = [0, 16], sizes = [16, 16], strides = [1, 1]} : vector<16x32xf32> to vector<16x16xf32>
    %cst_30 = arith.constant dense<0.000000e+00> : vector<16x16xf32>
    %76 = tpu.matmul %73, %74, %cst_30 {dimension_numbers = #tpu.dot_dimension_numbers<[1], [1], [0], [0], [0, 0, 1, 0], [], []>} : vector<16x16xf32>, vector<16x16xf32>, vector<16x16xf32> -> vector<16x16xf32>
    %cst_31 = arith.constant 2.500000e-01 : f32
    %77 = vector.broadcast %cst_31 : f32 to vector<16x16xf32>
    %78 = arith.mulf %76, %77 : vector<16x16xf32>
    %79 = arith.addf %78, %29 : vector<16x16xf32>
    %cst_32 = arith.constant dense<0xFF800000> : vector<16xf32>
    %80 = vector.multi_reduction <maximumf>, %79, %cst_32 [1] : vector<16x16xf32> to vector<16xf32>
    %81 = vector.shape_cast %80 : vector<16xf32> to vector<16x1xf32>
    %82 = vector.broadcast %81 : vector<16x1xf32> to vector<16x16xf32>
    %83 = arith.subf %79, %82 : vector<16x16xf32>
    %84 = math.exp %83 : vector<16x16xf32>
    %cst_33 = arith.constant dense<0.000000e+00> : vector<16xf32>
    %85 = vector.multi_reduction <add>, %84, %cst_33 [1] : vector<16x16xf32> to vector<16xf32>
    %86 = vector.shape_cast %85 : vector<16xf32> to vector<16x1xf32>
    %87 = tpu.reciprocal %86 : vector<16x1xf32> -> vector<16x1xf32>
    %88 = vector.broadcast %87 : vector<16x1xf32> to vector<16x16xf32>
    %89 = arith.mulf %84, %88 : vector<16x16xf32>
    %cst_34 = arith.constant dense<0.000000e+00> : vector<16x16xf32>
    %90 = tpu.matmul %89, %75, %cst_34 {dimension_numbers = #tpu.dot_dimension_numbers<[1], [0], [0], [1], [0, 0, 1, 1], [], []>} : vector<16x16xf32>, vector<16x16xf32>, vector<16x16xf32> -> vector<16x16xf32>
    %91 = vector.extract_strided_slice %30 {offsets = [32, 0], sizes = [16, 64], strides = [1, 1]} : vector<64x64xf32> to vector<16x64xf32>
    %cst_35 = arith.constant dense<0.000000e+00> : vector<16x64xf32>
    %92 = tpu.matmul %90, %91, %cst_35 {dimension_numbers = #tpu.dot_dimension_numbers<[1], [0], [0], [1], [0, 0, 1, 1], [], []>} : vector<16x16xf32>, vector<16x64xf32>, vector<16x64xf32> -> vector<16x64xf32>
    %93 = arith.addf %72, %92 : vector<16x64xf32>
    %94 = vector.extract_strided_slice %26 {offsets = [0, 48], sizes = [16, 16], strides = [1, 1]} : vector<16x64xf32> to vector<16x16xf32>
    %95 = vector.extract_strided_slice %27 {offsets = [0, 16], sizes = [16, 16], strides = [1, 1]} : vector<16x32xf32> to vector<16x16xf32>
    %96 = vector.extract_strided_slice %28 {offsets = [0, 16], sizes = [16, 16], strides = [1, 1]} : vector<16x32xf32> to vector<16x16xf32>
    %cst_36 = arith.constant dense<0.000000e+00> : vector<16x16xf32>
    %97 = tpu.matmul %94, %95, %cst_36 {dimension_numbers = #tpu.dot_dimension_numbers<[1], [1], [0], [0], [0, 0, 1, 0], [], []>} : vector<16x16xf32>, vector<16x16xf32>, vector<16x16xf32> -> vector<16x16xf32>
    %cst_37 = arith.constant 2.500000e-01 : f32
    %98 = vector.broadcast %cst_37 : f32 to vector<16x16xf32>
    %99 = arith.mulf %97, %98 : vector<16x16xf32>
    %100 = arith.addf %99, %29 : vector<16x16xf32>
    %cst_38 = arith.constant dense<0xFF800000> : vector<16xf32>
    %101 = vector.multi_reduction <maximumf>, %100, %cst_38 [1] : vector<16x16xf32> to vector<16xf32>
    %102 = vector.shape_cast %101 : vector<16xf32> to vector<16x1xf32>
    %103 = vector.broadcast %102 : vector<16x1xf32> to vector<16x16xf32>
    %104 = arith.subf %100, %103 : vector<16x16xf32>
    %105 = math.exp %104 : vector<16x16xf32>
    %cst_39 = arith.constant dense<0.000000e+00> : vector<16xf32>
    %106 = vector.multi_reduction <add>, %105, %cst_39 [1] : vector<16x16xf32> to vector<16xf32>
    %107 = vector.shape_cast %106 : vector<16xf32> to vector<16x1xf32>
    %108 = tpu.reciprocal %107 : vector<16x1xf32> -> vector<16x1xf32>
    %109 = vector.broadcast %108 : vector<16x1xf32> to vector<16x16xf32>
    %110 = arith.mulf %105, %109 : vector<16x16xf32>
    %cst_40 = arith.constant dense<0.000000e+00> : vector<16x16xf32>
    %111 = tpu.matmul %110, %96, %cst_40 {dimension_numbers = #tpu.dot_dimension_numbers<[1], [0], [0], [1], [0, 0, 1, 1], [], []>} : vector<16x16xf32>, vector<16x16xf32>, vector<16x16xf32> -> vector<16x16xf32>
    %112 = vector.extract_strided_slice %30 {offsets = [48, 0], sizes = [16, 64], strides = [1, 1]} : vector<64x64xf32> to vector<16x64xf32>
    %cst_41 = arith.constant dense<0.000000e+00> : vector<16x64xf32>
    %113 = tpu.matmul %111, %112, %cst_41 {dimension_numbers = #tpu.dot_dimension_numbers<[1], [0], [0], [1], [0, 0, 1, 1], [], []>} : vector<16x16xf32>, vector<16x64xf32>, vector<16x64xf32> -> vector<16x64xf32>
    %114 = arith.addf %93, %113 : vector<16x64xf32>
    %c0_42 = arith.constant 0 : index
    %c0_43 = arith.constant 0 : index
    %115 = vector.load %arg8[%c0_42, %c0_43] : memref<1x64xf32, #tpu.memory_space<vmem>>, vector<1x64xf32>
    %116 = arith.mulf %114, %114 : vector<16x64xf32>
    %cst_44 = arith.constant dense<0.000000e+00> : vector<16xf32>
    %117 = vector.multi_reduction <add>, %116, %cst_44 [1] : vector<16x64xf32> to vector<16xf32>
    %118 = vector.shape_cast %117 : vector<16xf32> to vector<16x1xf32>
    %cst_45 = arith.constant 6.400000e+01 : f32
    %119 = vector.broadcast %cst_45 : f32 to vector<16x1xf32>
    %120 = arith.divf %118, %119 : vector<16x1xf32>
    %cst_46 = arith.constant 9.99999974E-6 : f32
    %121 = vector.broadcast %cst_46 : f32 to vector<16x1xf32>
    %122 = arith.addf %120, %121 : vector<16x1xf32>
    %123 = math.rsqrt %122 : vector<16x1xf32>
    %124 = vector.broadcast %123 : vector<16x1xf32> to vector<16x64xf32>
    %125 = arith.mulf %114, %124 : vector<16x64xf32>
    %126 = vector.broadcast %115 : vector<1x64xf32> to vector<16x64xf32>
    %127 = arith.mulf %126, %125 : vector<16x64xf32>
    %c0_47 = arith.constant 0 : index
    %c0_48 = arith.constant 0 : index
    %128 = vector.load %arg9[%c0_47, %c0_48] : memref<64x384xf32, #tpu.memory_space<vmem>>, vector<64x384xf32>
    %cst_49 = arith.constant dense<0.000000e+00> : vector<16x384xf32>
    %129 = tpu.matmul %127, %128, %cst_49 {dimension_numbers = #tpu.dot_dimension_numbers<[1], [0], [0], [1], [0, 0, 1, 1], [], []>} : vector<16x64xf32>, vector<64x384xf32>, vector<16x384xf32> -> vector<16x384xf32>
    %130 = vector.extract_strided_slice %129 {offsets = [0, 0], sizes = [16, 192], strides = [1, 1]} : vector<16x384xf32> to vector<16x192xf32>
    %131 = vector.extract_strided_slice %129 {offsets = [0, 192], sizes = [16, 192], strides = [1, 1]} : vector<16x384xf32> to vector<16x192xf32>
    %cst_50 = arith.constant 0.000000e+00 : f32
    %132 = vector.broadcast %cst_50 : f32 to vector<16x192xf32>
    %133 = arith.subf %132, %130 : vector<16x192xf32>
    %134 = math.exp %133 : vector<16x192xf32>
    %cst_51 = arith.constant 1.000000e+00 : f32
    %135 = vector.broadcast %cst_51 : f32 to vector<16x192xf32>
    %136 = arith.addf %135, %134 : vector<16x192xf32>
    %137 = tpu.reciprocal %136 : vector<16x192xf32> -> vector<16x192xf32>
    %138 = arith.mulf %130, %137 : vector<16x192xf32>
    %139 = arith.mulf %138, %131 : vector<16x192xf32>
    %c0_52 = arith.constant 0 : index
    %c0_53 = arith.constant 0 : index
    %140 = vector.load %arg10[%c0_52, %c0_53] : memref<192x64xf32, #tpu.memory_space<vmem>>, vector<192x64xf32>
    %cst_54 = arith.constant dense<0.000000e+00> : vector<16x64xf32>
    %141 = tpu.matmul %139, %140, %cst_54 {dimension_numbers = #tpu.dot_dimension_numbers<[1], [0], [0], [1], [0, 0, 1, 1], [], []>} : vector<16x192xf32>, vector<192x64xf32>, vector<16x64xf32> -> vector<16x64xf32>
    %142 = arith.addf %114, %141 : vector<16x64xf32>
    %c0_55 = arith.constant 0 : index
    %c0_56 = arith.constant 0 : index
    %143 = vector.load %arg11[%c0_55, %c0_56] : memref<16x64xf32, #tpu.memory_space<vmem>>, vector<16x64xf32>
    tpu.vector_store %arg11[%c0_55, %c0_56], %142 {strides = array<i32>} : memref<16x64xf32, #tpu.memory_space<vmem>>, vector<16x64xf32>,
    return
  }
}

</mosaic_0001>

<llo_original>
// kernel: tpu_custom_call.1
$region0: #{tpu_custom_call.1}
  #allocation0 [shape = 'u32[]', space=smem, size = 0x4, offset = 0x4, fixed_abs, tag = 'smem constant byte address 0x4 - core index']
  #allocation1 [shape = 'u32[72,128]{1,0:T(1,128)}', space=vmem, size = 0x9000, scoped, tag = 'internal scratch']
  %s0 = inlined_call_operand.hbm [shape: f32[16,64], index: 0, kind: input, shape index: {}]
  %s1 = inlined_call_operand.hbm [shape: f32[16,128], index: 1, kind: input, shape index: {}]
  %s2 = inlined_call_operand.hbm [shape: f32[16,128], index: 2, kind: input, shape index: {}]
  %s3 = inlined_call_operand.hbm [shape: f32[16,128], index: 3, kind: input, shape index: {}]
  %s4 = inlined_call_operand.hbm [shape: f32[16,16], index: 4, kind: input, shape index: {}]
  %s5 = inlined_call_operand.vmem [shape: f32[64,128], index: 5, kind: input, shape index: {}]
  %s6 = inlined_call_operand.vmem [shape: f32[64,64], index: 6, kind: input, shape index: {}]
  %s7 = inlined_call_operand.vmem [shape: f32[1,64], index: 7, kind: input, shape index: {}]
  %s8 = inlined_call_operand.vmem [shape: f32[1,64], index: 8, kind: input, shape index: {}]
  %s9 = inlined_call_operand.vmem [shape: f32[64,384], index: 9, kind: input, shape index: {}]
  %s10 = inlined_call_operand.vmem [shape: f32[192,64], index: 10, kind: input, shape index: {}]
  %s11 = inlined_call_operand.hbm [shape: f32[16,64], index: 11, kind: output, shape index: {}]
  %s12 = sld [smem:[#allocation0]]
  $region74: #{tpu_custom_call.1} parent=0
    _
  %s14 = ssub.s32 1, %s12
  %s15 = scalar_select 0, %s14, %s12
  $region1: #{tpu_custom_call.1} parent=0
    #allocation2 [shape = 'u8[8192]{0}', space=vmem, size = 0x2000, scoped, tag = 'input window, operand 0, single buffered']
    #allocation3 [shape = 's32[1]{0}', space=sflag, size = 0x4, scoped, tag = 'scoped memory for tpu_custom_call.1']
    #allocation4 [shape = 's32[1]{0}', space=sflag, size = 0x4, scoped, tag = 'scoped memory for tpu_custom_call.1']
    #allocation5 [shape = 'u8[8192]{0}', space=vmem, size = 0x2000, scoped, tag = 'input window, operand 1, single buffered']
    #allocation6 [shape = 's32[1]{0}', space=sflag, size = 0x4, scoped, tag = 'scoped memory for tpu_custom_call.1']
    #allocation7 [shape = 'u8[8192]{0}', space=vmem, size = 0x2000, scoped, tag = 'input window, operand 2, single buffered']
    #allocation8 [shape = 'u8[8192]{0}', space=vmem, size = 0x2000, scoped, tag = 'input window, operand 3, single buffered']
    #allocation9 [shape = 's32[1]{0}', space=sflag, size = 0x4, scoped, tag = 'scoped memory for tpu_custom_call.1']
    #allocation10 [shape = 'u8[8192]{0}', space=vmem, size = 0x2000, scoped, tag = 'input window, operand 4, single buffered']
    #allocation11 [shape = 'u8[8192]{0}', space=vmem, size = 0x2000, scoped, tag = 'output window, operand 0, single buffered']
    %16 = vsyncpa [#allocation3], 0
    %17 = vsyncpa [#allocation6], 0
    %18 = vsyncpa [#allocation9], 0
    %19 = vsyncpa [#allocation4], 0
    // Predicated region
    $region2: #{tpu_custom_call.1} parent=1 // pred_check
      _
    $region3: #{tpu_custom_call.1} parent=1 // pred_check_branch
      %21 = sbr.rel (0) target = $region5
    $region4: #{tpu_custom_call.1} parent=1 // pred_region
      %23 = vsyncadd [#allocation3], 0
      %s24 = sshll.u32 %s0, 4
      %s25 = int_to_ptr.hbm [resolvable:$true] %s24
      %s26 = sshll.u32 [#allocation2], 4
      %s27 = int_to_ptr.vmem [resolvable:$true] %s26
      %32 = dma.hbm_to_vmem [thread:$0]  %s25, 256, %s27, [#allocation3], 128, 128, 8
    $region5: #{tpu_custom_call.1} parent=1 // pred_fallthru
      _
    // Predicated region
    $region6: #{tpu_custom_call.1} parent=1 // pred_check
      _
    $region7: #{tpu_custom_call.1} parent=1 // pred_check_branch
      %34 = sbr.rel (0) target = $region9
    $region8: #{tpu_custom_call.1} parent=1 // pred_region
      %36 = vsyncadd [#allocation6], 0
      %s37 = sshll.u32 %s1, 4
      %s38 = int_to_ptr.hbm [resolvable:$true] %s37
      %s39 = sshll.u32 [#allocation5], 4
      %s40 = int_to_ptr.vmem [resolvable:$true] %s39
      %45 = dma.hbm_to_vmem [thread:$0]  %s38, 256, %s40, [#allocation6], 128, 128, 8
    $region9: #{tpu_custom_call.1} parent=1 // pred_fallthru
      _
    // Predicated region
    $region10: #{tpu_custom_call.1} parent=1 // pred_check
      _
    $region11: #{tpu_custom_call.1} parent=1 // pred_check_branch
      %47 = sbr.rel (0) target = $region13
    $region12: #{tpu_custom_call.1} parent=1 // pred_region
      %49 = vsyncadd [#allocation6], 0
      %s50 = sshll.u32 %s2, 4
      %s51 = int_to_ptr.hbm [resolvable:$true] %s50
      %s52 = sshll.u32 [#allocation7], 4
      %s53 = int_to_ptr.vmem [resolvable:$true] %s52
      %58 = dma.hbm_to_vmem [thread:$0]  %s51, 256, %s53, [#allocation6], 128, 128, 8
    $region13: #{tpu_custom_call.1} parent=1 // pred_fallthru
      _
    // Predicated region
    $region14: #{tpu_custom_call.1} parent=1 // pred_check
      _
    $region15: #{tpu_custom_call.1} parent=1 // pred_check_branch
      %60 = sbr.rel (0) target = $region17
    $region16: #{tpu_custom_call.1} parent=1 // pred_region
      %62 = vsyncadd [#allocation9], 0
      %s63 = sshll.u32 %s3, 4
      %s64 = int_to_ptr.hbm [resolvable:$true] %s63
      %s65 = sshll.u32 [#allocation8], 4
      %s66 = int_to_ptr.vmem [resolvable:$true] %s65
      %71 = dma.hbm_to_vmem [thread:$0]  %s64, 256, %s66, [#allocation9], 128, 128, 8
    $region17: #{tpu_custom_call.1} parent=1 // pred_fallthru
      _
    // Predicated region
    $region18: #{tpu_custom_call.1} parent=1 // pred_check
      _
    $region19: #{tpu_custom_call.1} parent=1 // pred_check_branch
      %73 = sbr.rel (0) target = $region21
    $region20: #{tpu_custom_call.1} parent=1 // pred_region
      %75 = vsyncadd [#allocation9], 0
      %s76 = sshll.u32 %s4, 4
      %s77 = int_to_ptr.hbm [resolvable:$true] %s76
      %s78 = sshll.u32 [#allocation10], 4
      %s79 = int_to_ptr.vmem [resolvable:$true] %s78
      %84 = dma.hbm_to_vmem [thread:$0]  %s77, 256, %s79, [#allocation9], 128, 128, 8
    $region21: #{tpu_custom_call.1} parent=1 // pred_fallthru
      _
    // Predicated region
    $region22: #{tpu_custom_call.1} parent=1 // pred_check
      _
    $region23: #{tpu_custom_call.1} parent=1 // pred_check_branch
      %86 = sbr.rel (0) target = $region25
    $region24: #{tpu_custom_call.1} parent=1 // pred_region
      _
    $region25: #{tpu_custom_call.1} parent=1 // pred_fallthru
      _
    // Predicated region
    $region26: #{tpu_custom_call.1} parent=1 // pred_check
      _
    $region27: #{tpu_custom_call.1} parent=1 // pred_check_branch
      %88 = sbr.rel (0) target = $region29
    $region28: #{tpu_custom_call.1} parent=1 // pred_region
      _
    $region29: #{tpu_custom_call.1} parent=1 // pred_fallthru
      _
    // Predicated region
    $region30: #{tpu_custom_call.1} parent=1 // pred_check
      _
    $region31: #{tpu_custom_call.1} parent=1 // pred_check_branch
      %90 = sbr.rel (0) target = $region33
    $region32: #{tpu_custom_call.1} parent=1 // pred_region
      _
    $region33: #{tpu_custom_call.1} parent=1 // pred_fallthru
      _
    // Predicated region
    $region34: #{tpu_custom_call.1} parent=1 // pred_check
      _
    $region35: #{tpu_custom_call.1} parent=1 // pred_check_branch
      %92 = sbr.rel (0) target = $region37
    $region36: #{tpu_custom_call.1} parent=1 // pred_region
      _
    $region37: #{tpu_custom_call.1} parent=1 // pred_fallthru
      _
    // Predicated region
    $region38: #{tpu_custom_call.1} parent=1 // pred_check
      _
    $region39: #{tpu_custom_call.1} parent=1 // pred_check_branch
      %94 = sbr.rel (0) target = $region41
    $region40: #{tpu_custom_call.1} parent=1 // pred_region
      _
    $region41: #{tpu_custom_call.1} parent=1 // pred_fallthru
      _
    // Predicated region
    $region42: #{tpu_custom_call.1} parent=1 // pred_check
      _
    $region43: #{tpu_custom_call.1} parent=1 // pred_check_branch
      %96 = sbr.rel (0) target = $region45
    $region44: #{tpu_custom_call.1} parent=1 // pred_region
      _
    $region45: #{tpu_custom_call.1} parent=1 // pred_fallthru
      _
    // Predicated region
    $region46: #{tpu_custom_call.1} parent=1 // pred_check
      _
    $region47: #{tpu_custom_call.1} parent=1 // pred_check_branch
      %98 = sbr.rel (0) target = $region49
    $region48: #{tpu_custom_call.1} parent=1 // pred_region
      %100 = dma.done [#allocation3], 256
    $region49: #{tpu_custom_call.1} parent=1 // pred_fallthru
      _
    // Predicated region
    $region50: #{tpu_custom_call.1} parent=1 // pred_check
      _
    $region51: #{tpu_custom_call.1} parent=1 // pred_check_branch
      %102 = sbr.rel (0) target = $region53
    $region52: #{tpu_custom_call.1} parent=1 // pred_region
      %104 = dma.done [#allocation6], 256
    $region53: #{tpu_custom_call.1} parent=1 // pred_fallthru
      _
    // Predicated region
    $region54: #{tpu_custom_call.1} parent=1 // pred_check
      _
    $region55: #{tpu_custom_call.1} parent=1 // pred_check_branch
      %106 = sbr.rel (0) target = $region57
    $region56: #{tpu_custom_call.1} parent=1 // pred_region
      %108 = dma.done [#allocation6], 256
    $region57: #{tpu_custom_call.1} parent=1 // pred_fallthru
      _
    // Predicated region
    $region58: #{tpu_custom_call.1} parent=1 // pred_check
      _
    $region59: #{tpu_custom_call.1} parent=1 // pred_check_branch
      %110 = sbr.rel (0) target = $region61
    $region60: #{tpu_custom_call.1} parent=1 // pred_region
      %112 = dma.done [#allocation9], 256
    $region61: #{tpu_custom_call.1} parent=1 // pred_fallthru
      _
    // Predicated region
    $region62: #{tpu_custom_call.1} parent=1 // pred_check
      _
    $region63: #{tpu_custom_call.1} parent=1 // pred_check_branch
      %114 = sbr.rel (0) target = $region65
    $region64: #{tpu_custom_call.1} parent=1 // pred_region
      %116 = dma.done [#allocation9], 256
    $region65: #{tpu_custom_call.1} parent=1 // pred_fallthru
      _
    %v117 = vld [vmem:[#allocation2] sm:$0xff]
    %v118 = vld [vmem:[#allocation2 + $0x8] sm:$0xff]
    %v119 = vld [vmem:[%s7] sm:$0x1]
    %v120 = vmul.f32 %v117, %v117
    %v121 = vmul.f32 %v118, %v118
    %vm122 = vcmask 523264
    %v123 = vsel %vm122, %v120, 0.0
    %124 = vadd.xlane.f32.xlu0 %v123
    %v125 = vpop.xlane.xlu0 %124
    %v126 = vsel %vm122, %v121, 0.0
    %127 = vadd.xlane.f32.xlu0 %v126
    %v128 = vpop.xlane.xlu0 %127
    %v129 = vrcp.pop 64.0
    %v130 = vmul.f32 64.0, %v129
    %v131 = vsub.f32 1.0, %v130
    %v132 = vmul.f32 %v129, %v131
    %v133 = vadd.f32 %v129, %v132
    %vm134 = vweird.f32 %v129
    %v135 = vsel %vm134, %v129, %v133
    %v136 = vmul.f32 %v125, %v135
    %v137 = vmul.f32 %v128, %v135
    %v138 = vadd.f32 %v136, 1e-05
    %v139 = vadd.f32 %v137, 1e-05
    %v140 = vrsqrt.pop %v138
    %v141 = vmul.f32 %v140, %v138
    %v142 = vmul.f32 %v141, %v140
    %v143 = vmul.f32 0.5, %v142
    %v144 = vsub.f32 1.5, %v143
    %v145 = vmul.f32 %v140, %v144
    %vm146 = vweird.f32 %v138
    %vm147 = vweird.f32 %v140
    %vm148 = vmor %vm146, %vm147
    %v149 = vsel %vm148, %v140, %v145
    %v150 = vrsqrt.pop %v139
    %v151 = vmul.f32 %v150, %v139
    %v152 = vmul.f32 %v151, %v150
    %v153 = vmul.f32 0.5, %v152
    %v154 = vsub.f32 1.5, %v153
    %v155 = vmul.f32 %v150, %v154
    %vm156 = vweird.f32 %v139
    %vm157 = vweird.f32 %v150
    %vm158 = vmor %vm156, %vm157
    %v159 = vsel %vm158, %v150, %v155
    %v160 = vmul.f32 %v117, %v149
    %v161 = vmul.f32 %v118, %v159
    %v163 = vperm.slane %v119, 0
    %v165 = vmul.f32 %v163, %v160
    %v166 = vmul.f32 %v163, %v161
    %v167 = vld [vmem:[%s5] sm:$0xff]
    %v168 = vld [vmem:[%s5 + $0x8] sm:$0xff]
    %v169 = vld [vmem:[%s5 + $0x10] sm:$0xff]
    %v170 = vld [vmem:[%s5 + $0x18] sm:$0xff]
    %v171 = vld [vmem:[%s5 + $0x20] sm:$0xff]
    %v172 = vld [vmem:[%s5 + $0x28] sm:$0xff]
    %v173 = vld [vmem:[%s5 + $0x30] sm:$0xff]
    %v174 = vld [vmem:[%s5 + $0x38] sm:$0xff]
    %v176 = vsel %vm122, %v165, 0
    %v179 = vsel %vm122, %v166, 0
    %181 = vmatpush.msra.mxu0 0.0
    %182 = vmatpush.msra.mxu0 0.0
    %183 = vmatpush.msra.mxu0 0.0
    %184 = vmatpush.msra.mxu0 0.0
    %185 = vmatpush.msra.mxu0 0.0
    %186 = vmatpush.msra.mxu0 0.0
    %187 = vmatpush.msra.mxu0 0.0
    %188 = vmatpush.msra.mxu0 0.0
    %189 = vmatpush.msra.mxu0 %v174
    %190 = vmatpush.msra.mxu0 %v173
    %191 = vmatpush.msra.mxu0 %v172
    %192 = vmatpush.msra.mxu0 %v171
    %193 = vmatpush.msra.mxu0 %v170
    %194 = vmatpush.msra.mxu0 %v169
    %195 = vmatpush.msra.mxu0 %v168
    %196 = vmatpush.msra.mxu0 %v167
    %197 = vmatmul.f32.gmra.mxu0 %v176
    %v198 = vpop.f32.mrf.mxu0
    %v199 = vadd.f32 0.0, %v198
    %200 = vmatmul.f32.gmra.mxu0 %v179
    %v201 = vpop.f32.mrf.mxu0
    %v202 = vadd.f32 0.0, %v201
    %203 = vdwg.mxu0
    %204 = vrot.lane.b32.xlu0 %v199, 1
    %v205 = vpop.permute.xlu0 %204
    %206 = vrot.lane.b32.xlu0 %v202, 1
    %v207 = vpop.permute.xlu0 %206
    %208 = vrot.lane.b32.xlu0 %v199, 127
    %v209 = vpop.permute.xlu0 %208
    %210 = vrot.lane.b32.xlu0 %v202, 127
    %v211 = vpop.permute.xlu0 %210
    %v212 = vld [vmem:[#allocation5] sm:$0xff]
    %v213 = vld [vmem:[#allocation5 + $0x8] sm:$0xff]
    %v214 = vmul.f32 %v199, %v212
    %v215 = vmul.f32 %v202, %v213
    %v216 = vld [vmem:[#allocation7] sm:$0xff]
    %v217 = vld [vmem:[#allocation7 + $0x8] sm:$0xff]
    %v218 = vmul.f32 %v209, %v216
    %v219 = vmul.f32 %v211, %v217
    %v220 = vadd.f32 %v214, %v218
    %v221 = vadd.f32 %v215, %v219
    %v222 = vld [vmem:[#allocation8] sm:$0xff]
    %v223 = vld [vmem:[#allocation8 + $0x8] sm:$0xff]
    %v224 = vmul.f32 %v205, %v222
    %v225 = vmul.f32 %v207, %v223
    %v226 = vadd.f32 %v220, %v224
    %v227 = vadd.f32 %v221, %v225
    %v228 = vld [vmem:[#allocation10] sm:$0xff]
    %v229 = vld [vmem:[#allocation10 + $0x8] sm:$0xff]
    %v230 = vld [vmem:[%s6] sm:$0xff]
    %v231 = vld [vmem:[%s6 + $0x8] sm:$0xff]
    %v232 = vld [vmem:[%s6 + $0x10] sm:$0xff]
    %v233 = vld [vmem:[%s6 + $0x18] sm:$0xff]
    %v234 = vld [vmem:[%s6 + $0x20] sm:$0xff]
    %v235 = vld [vmem:[%s6 + $0x28] sm:$0xff]
    %v236 = vld [vmem:[%s6 + $0x30] sm:$0xff]
    %v237 = vld [vmem:[%s6 + $0x38] sm:$0xff]
    %240 = vrot.lane.b32.xlu0 %v226, 64
    %v241 = vpop.permute.xlu0 %240
    %242 = vrot.lane.b32.xlu0 %v227, 64
    %v243 = vpop.permute.xlu0 %242
    %vm244 = vcmask 130048
    %v245 = vsel %vm244, %v226, 0
    %v247 = vsel %vm244, %v227, 0
    %v249 = vsel %vm244, %v241, 0
    %v251 = vsel %vm244, %v243, 0
    %253 = vmatpush.xpose.msra.mxu0 0.0
    %254 = vmatpush.xpose.msra.mxu0 0.0
    %255 = vmatpush.xpose.msra.mxu0 0.0
    %256 = vmatpush.xpose.msra.mxu0 0.0
    %257 = vmatpush.xpose.msra.mxu0 0.0
    %258 = vmatpush.xpose.msra.mxu0 0.0
    %259 = vmatpush.xpose.msra.mxu0 0.0
    %260 = vmatpush.xpose.msra.mxu0 0.0
    %261 = vmatpush.xpose.msra.mxu0 0.0
    %262 = vmatpush.xpose.msra.mxu0 0.0
    %263 = vmatpush.xpose.msra.mxu0 0.0
    %264 = vmatpush.xpose.msra.mxu0 0.0
    %265 = vmatpush.xpose.msra.mxu0 0.0
    %266 = vmatpush.xpose.msra.mxu0 0.0
    %267 = vmatpush.xpose.msra.mxu0 %v251
    %268 = vmatpush.xpose.msra.mxu0 %v249
    %269 = vmatmul.f32.gmra.mxu0 %v245
    %v270 = vpop.f32.mrf.mxu0
    %v271 = vadd.f32 0.0, %v270
    %272 = vmatmul.f32.gmra.mxu0 %v247
    %v273 = vpop.f32.mrf.mxu0
    %v274 = vadd.f32 0.0, %v273
    %275 = vdwg.mxu0
    %v276 = vmul.f32 %v271, 0.25
    %v277 = vmul.f32 %v274, 0.25
    %v278 = vadd.f32 %v276, %v228
    %v279 = vadd.f32 %v277, %v229
    %v280 = vsel %vm244, %v278, -inf
    %281 = vmax.xlane.f32.xlu0 %v280
    %v282 = vpop.xlane.xlu0 %281
    %v283 = vsel %vm244, %v279, -inf
    %284 = vmax.xlane.f32.xlu0 %v283
    %v285 = vpop.xlane.xlu0 %284
    %v286 = vsub.f32 %v278, %v282
    %v287 = vsub.f32 %v279, %v285
    %v288 = vmul.f32 %v286, 1.442695
    %v289 = vpow.pop %v288
    %v290 = vmul.f32 %v287, 1.442695
    %v291 = vpow.pop %v290
    %v292 = vsel %vm244, %v289, 0.0
    %293 = vadd.xlane.f32.xlu0 %v292
    %v294 = vpop.xlane.xlu0 %293
    %v295 = vsel %vm244, %v291, 0.0
    %296 = vadd.xlane.f32.xlu0 %v295
    %v297 = vpop.xlane.xlu0 %296
    %v298 = vrcp.pop %v294
    %v299 = vmul.f32 %v294, %v298
    %v300 = vsub.f32 1.0, %v299
    %v301 = vmul.f32 %v298, %v300
    %v302 = vadd.f32 %v298, %v301
    %vm303 = vweird.f32 %v294
    %vm304 = vweird.f32 %v298
    %vm305 = vmor %vm303, %vm304
    %v306 = vsel %vm305, %v298, %v302
    %v307 = vand.u32 2147483647, %v294
    %vm308 = vcmp.eq.f32.partialorder %v307, 8.507059e+37
    %v309 = vand.u32 %v294, 2147483648
    %v310 = vor.u32 1.1754944e-38, %v309
    %v311 = vsel %vm308, %v310, %v306
    %v312 = vrcp.pop %v297
    %v313 = vmul.f32 %v297, %v312
    %v314 = vsub.f32 1.0, %v313
    %v315 = vmul.f32 %v312, %v314
    %v316 = vadd.f32 %v312, %v315
    %vm317 = vweird.f32 %v297
    %vm318 = vweird.f32 %v312
    %vm319 = vmor %vm317, %vm318
    %v320 = vsel %vm319, %v312, %v316
    %v321 = vand.u32 2147483647, %v297
    %vm322 = vcmp.eq.f32.partialorder %v321, 8.507059e+37
    %v323 = vand.u32 %v297, 2147483648
    %v324 = vor.u32 1.1754944e-38, %v323
    %v325 = vsel %vm322, %v324, %v320
    %v326 = vmul.f32 %v289, %v311
    %v327 = vmul.f32 %v291, %v325
    %328 = vrot.lane.b32.xlu0 %v226, 32
    %v329 = vpop.permute.xlu0 %328
    %330 = vrot.lane.b32.xlu0 %v227, 32
    %v331 = vpop.permute.xlu0 %330
    %v335 = vsel %vm244, %v326, 0
    %v338 = vsel %vm244, %v327, 0
    %340 = vmatpush.msra.mxu0 0.0
    %341 = vmatpush.msra.mxu0 0.0
    %342 = vmatpush.msra.mxu0 0.0
    %343 = vmatpush.msra.mxu0 0.0
    %344 = vmatpush.msra.mxu0 0.0
    %345 = vmatpush.msra.mxu0 0.0
    %346 = vmatpush.msra.mxu0 0.0
    %347 = vmatpush.msra.mxu0 0.0
    %348 = vmatpush.msra.mxu0 0.0
    %349 = vmatpush.msra.mxu0 0.0
    %350 = vmatpush.msra.mxu0 0.0
    %351 = vmatpush.msra.mxu0 0.0
    %352 = vmatpush.msra.mxu0 0.0
    %353 = vmatpush.msra.mxu0 0.0
    %354 = vmatpush.msra.mxu0 %v331
    %355 = vmatpush.msra.mxu0 %v329
    %356 = vmatmul.f32.gmra.mxu0 %v335
    %v357 = vpop.f32.mrf.mxu0
    %v358 = vadd.f32 0.0, %v357
    %359 = vmatmul.f32.gmra.mxu0 %v338
    %v360 = vpop.f32.mrf.mxu0
    %v361 = vadd.f32 0.0, %v360
    %362 = vdwg.mxu0
    %v364 = vsel %vm244, %v358, 0
    %v367 = vsel %vm244, %v361, 0
    %369 = vmatpush.msra.mxu0 0.0
    %370 = vmatpush.msra.mxu0 0.0
    %371 = vmatpush.msra.mxu0 0.0
    %372 = vmatpush.msra.mxu0 0.0
    %373 = vmatpush.msra.mxu0 0.0
    %374 = vmatpush.msra.mxu0 0.0
    %375 = vmatpush.msra.mxu0 0.0
    %376 = vmatpush.msra.mxu0 0.0
    %377 = vmatpush.msra.mxu0 0.0
    %378 = vmatpush.msra.mxu0 0.0
    %379 = vmatpush.msra.mxu0 0.0
    %380 = vmatpush.msra.mxu0 0.0
    %381 = vmatpush.msra.mxu0 0.0
    %382 = vmatpush.msra.mxu0 0.0
    %383 = vmatpush.msra.mxu0 %v231
    %384 = vmatpush.msra.mxu0 %v230
    %385 = vmatmul.f32.gmra.mxu0 %v364
    %v386 = vpop.f32.mrf.mxu0
    %v387 = vadd.f32 0.0, %v386
    %388 = vmatmul.f32.gmra.mxu0 %v367
    %v389 = vpop.f32.mrf.mxu0
    %v390 = vadd.f32 0.0, %v389
    %391 = vdwg.mxu0
    %v392 = vadd.f32 %v117, %v387
    %v393 = vadd.f32 %v118, %v390
    %394 = vrot.lane.b32.xlu0 %v226, 112
    %v395 = vpop.permute.xlu0 %394
    %396 = vrot.lane.b32.xlu0 %v227, 112
    %v397 = vpop.permute.xlu0 %396
    %v398 = vsel %vm244, %v395, 0
    %v400 = vsel %vm244, %v397, 0
    %402 = vmatpush.xpose.msra.mxu0 0.0
    %403 = vmatpush.xpose.msra.mxu0 0.0
    %404 = vmatpush.xpose.msra.mxu0 0.0
    %405 = vmatpush.xpose.msra.mxu0 0.0
    %406 = vmatpush.xpose.msra.mxu0 0.0
    %407 = vmatpush.xpose.msra.mxu0 0.0
    %408 = vmatpush.xpose.msra.mxu0 0.0
    %409 = vmatpush.xpose.msra.mxu0 0.0
    %410 = vmatpush.xpose.msra.mxu0 0.0
    %411 = vmatpush.xpose.msra.mxu0 0.0
    %412 = vmatpush.xpose.msra.mxu0 0.0
    %413 = vmatpush.xpose.msra.mxu0 0.0
    %414 = vmatpush.xpose.msra.mxu0 0.0
    %415 = vmatpush.xpose.msra.mxu0 0.0
    %416 = vmatpush.xpose.msra.mxu0 %v251
    %417 = vmatpush.xpose.msra.mxu0 %v249
    %418 = vmatmul.f32.gmra.mxu0 %v398
    %v419 = vpop.f32.mrf.mxu0
    %v420 = vadd.f32 0.0, %v419
    %421 = vmatmul.f32.gmra.mxu0 %v400
    %v422 = vpop.f32.mrf.mxu0
    %v423 = vadd.f32 0.0, %v422
    %424 = vdwg.mxu0
    %v425 = vmul.f32 %v420, 0.25
    %v426 = vmul.f32 %v423, 0.25
    %v427 = vadd.f32 %v425, %v228
    %v428 = vadd.f32 %v426, %v229
    %v429 = vsel %vm244, %v427, -inf
    %430 = vmax.xlane.f32.xlu0 %v429
    %v431 = vpop.xlane.xlu0 %430
    %v432 = vsel %vm244, %v428, -inf
    %433 = vmax.xlane.f32.xlu0 %v432
    %v434 = vpop.xlane.xlu0 %433
    %v435 = vsub.f32 %v427, %v431
    %v436 = vsub.f32 %v428, %v434
    %v437 = vmul.f32 %v435, 1.442695
    %v438 = vpow.pop %v437
    %v439 = vmul.f32 %v436, 1.442695
    %v440 = vpow.pop %v439
    %v441 = vsel %vm244, %v438, 0.0
    %442 = vadd.xlane.f32.xlu0 %v441
    %v443 = vpop.xlane.xlu0 %442
    %v444 = vsel %vm244, %v440, 0.0
    %445 = vadd.xlane.f32.xlu0 %v444
    %v446 = vpop.xlane.xlu0 %445
    %v447 = vrcp.pop %v443
    %v448 = vmul.f32 %v443, %v447
    %v449 = vsub.f32 1.0, %v448
    %v450 = vmul.f32 %v447, %v449
    %v451 = vadd.f32 %v447, %v450
    %vm452 = vweird.f32 %v443
    %vm453 = vweird.f32 %v447
    %vm454 = vmor %vm452, %vm453
    %v455 = vsel %vm454, %v447, %v451
    %v456 = vand.u32 2147483647, %v443
    %vm457 = vcmp.eq.f32.partialorder %v456, 8.507059e+37
    %v458 = vand.u32 %v443, 2147483648
    %v459 = vor.u32 1.1754944e-38, %v458
    %v460 = vsel %vm457, %v459, %v455
    %v461 = vrcp.pop %v446
    %v462 = vmul.f32 %v446, %v461
    %v463 = vsub.f32 1.0, %v462
    %v464 = vmul.f32 %v461, %v463
    %v465 = vadd.f32 %v461, %v464
    %vm466 = vweird.f32 %v446
    %vm467 = vweird.f32 %v461
    %vm468 = vmor %vm466, %vm467
    %v469 = vsel %vm468, %v461, %v465
    %v470 = vand.u32 2147483647, %v446
    %vm471 = vcmp.eq.f32.partialorder %v470, 8.507059e+37
    %v472 = vand.u32 %v446, 2147483648
    %v473 = vor.u32 1.1754944e-38, %v472
    %v474 = vsel %vm471, %v473, %v469
    %v475 = vmul.f32 %v438, %v460
    %v476 = vmul.f32 %v440, %v474
    %v478 = vsel %vm244, %v475, 0
    %v481 = vsel %vm244, %v476, 0
    %483 = vmatpush.msra.mxu0 0.0
    %484 = vmatpush.msra.mxu0 0.0
    %485 = vmatpush.msra.mxu0 0.0
    %486 = vmatpush.msra.mxu0 0.0
    %487 = vmatpush.msra.mxu0 0.0
    %488 = vmatpush.msra.mxu0 0.0
    %489 = vmatpush.msra.mxu0 0.0
    %490 = vmatpush.msra.mxu0 0.0
    %491 = vmatpush.msra.mxu0 0.0
    %492 = vmatpush.msra.mxu0 0.0
    %493 = vmatpush.msra.mxu0 0.0
    %494 = vmatpush.msra.mxu0 0.0
    %495 = vmatpush.msra.mxu0 0.0
    %496 = vmatpush.msra.mxu0 0.0
    %497 = vmatpush.msra.mxu0 %v331
    %498 = vmatpush.msra.mxu0 %v329
    %499 = vmatmul.f32.gmra.mxu0 %v478
    %v500 = vpop.f32.mrf.mxu0
    %v501 = vadd.f32 0.0, %v500
    %502 = vmatmul.f32.gmra.mxu0 %v481
    %v503 = vpop.f32.mrf.mxu0
    %v504 = vadd.f32 0.0, %v503
    %505 = vdwg.mxu0
    %v507 = vsel %vm244, %v501, 0
    %v510 = vsel %vm244, %v504, 0
    %512 = vmatpush.msra.mxu0 0.0
    %513 = vmatpush.msra.mxu0 0.0
    %514 = vmatpush.msra.mxu0 0.0
    %515 = vmatpush.msra.mxu0 0.0
    %516 = vmatpush.msra.mxu0 0.0
    %517 = vmatpush.msra.mxu0 0.0
    %518 = vmatpush.msra.mxu0 0.0
    %519 = vmatpush.msra.mxu0 0.0
    %520 = vmatpush.msra.mxu0 0.0
    %521 = vmatpush.msra.mxu0 0.0
    %522 = vmatpush.msra.mxu0 0.0
    %523 = vmatpush.msra.mxu0 0.0
    %524 = vmatpush.msra.mxu0 0.0
    %525 = vmatpush.msra.mxu0 0.0
    %526 = vmatpush.msra.mxu0 %v233
    %527 = vmatpush.msra.mxu0 %v232
    %528 = vmatmul.f32.gmra.mxu0 %v507
    %v529 = vpop.f32.mrf.mxu0
    %v530 = vadd.f32 0.0, %v529
    %531 = vmatmul.f32.gmra.mxu0 %v510
    %v532 = vpop.f32.mrf.mxu0
    %v533 = vadd.f32 0.0, %v532
    %534 = vdwg.mxu0
    %v535 = vadd.f32 %v392, %v530
    %v536 = vadd.f32 %v393, %v533
    %537 = vrot.lane.b32.xlu0 %v226, 96
    %v538 = vpop.permute.xlu0 %537
    %539 = vrot.lane.b32.xlu0 %v227, 96
    %v540 = vpop.permute.xlu0 %539
    %541 = vrot.lane.b32.xlu0 %v226, 48
    %v542 = vpop.permute.xlu0 %541
    %543 = vrot.lane.b32.xlu0 %v227, 48
    %v544 = vpop.permute.xlu0 %543
    %v545 = vsel %vm244, %v538, 0
    %v547 = vsel %vm244, %v540, 0
    %v549 = vsel %vm244, %v542, 0
    %v551 = vsel %vm244, %v544, 0
    %553 = vmatpush.xpose.msra.mxu0 0.0
    %554 = vmatpush.xpose.msra.mxu0 0.0
    %555 = vmatpush.xpose.msra.mxu0 0.0
    %556 = vmatpush.xpose.msra.mxu0 0.0
    %557 = vmatpush.xpose.msra.mxu0 0.0
    %558 = vmatpush.xpose.msra.mxu0 0.0
    %559 = vmatpush.xpose.msra.mxu0 0.0
    %560 = vmatpush.xpose.msra.mxu0 0.0
    %561 = vmatpush.xpose.msra.mxu0 0.0
    %562 = vmatpush.xpose.msra.mxu0 0.0
    %563 = vmatpush.xpose.msra.mxu0 0.0
    %564 = vmatpush.xpose.msra.mxu0 0.0
    %565 = vmatpush.xpose.msra.mxu0 0.0
    %566 = vmatpush.xpose.msra.mxu0 0.0
    %567 = vmatpush.xpose.msra.mxu0 %v551
    %568 = vmatpush.xpose.msra.mxu0 %v549
    %569 = vmatmul.f32.gmra.mxu0 %v545
    %v570 = vpop.f32.mrf.mxu0
    %v571 = vadd.f32 0.0, %v570
    %572 = vmatmul.f32.gmra.mxu0 %v547
    %v573 = vpop.f32.mrf.mxu0
    %v574 = vadd.f32 0.0, %v573
    %575 = vdwg.mxu0
    %v576 = vmul.f32 %v571, 0.25
    %v577 = vmul.f32 %v574, 0.25
    %v578 = vadd.f32 %v576, %v228
    %v579 = vadd.f32 %v577, %v229
    %v580 = vsel %vm244, %v578, -inf
    %581 = vmax.xlane.f32.xlu0 %v580
    %v582 = vpop.xlane.xlu0 %581
    %v583 = vsel %vm244, %v579, -inf
    %584 = vmax.xlane.f32.xlu0 %v583
    %v585 = vpop.xlane.xlu0 %584
    %v586 = vsub.f32 %v578, %v582
    %v587 = vsub.f32 %v579, %v585
    %v588 = vmul.f32 %v586, 1.442695
    %v589 = vpow.pop %v588
    %v590 = vmul.f32 %v587, 1.442695
    %v591 = vpow.pop %v590
    %v592 = vsel %vm244, %v589, 0.0
    %593 = vadd.xlane.f32.xlu0 %v592
    %v594 = vpop.xlane.xlu0 %593
    %v595 = vsel %vm244, %v591, 0.0
    %596 = vadd.xlane.f32.xlu0 %v595
    %v597 = vpop.xlane.xlu0 %596
    %v598 = vrcp.pop %v594
    %v599 = vmul.f32 %v594, %v598
    %v600 = vsub.f32 1.0, %v599
    %v601 = vmul.f32 %v598, %v600
    %v602 = vadd.f32 %v598, %v601
    %vm603 = vweird.f32 %v594
    %vm604 = vweird.f32 %v598
    %vm605 = vmor %vm603, %vm604
    %v606 = vsel %vm605, %v598, %v602
    %v607 = vand.u32 2147483647, %v594
    %vm608 = vcmp.eq.f32.partialorder %v607, 8.507059e+37
    %v609 = vand.u32 %v594, 2147483648
    %v610 = vor.u32 1.1754944e-38, %v609
    %v611 = vsel %vm608, %v610, %v606
    %v612 = vrcp.pop %v597
    %v613 = vmul.f32 %v597, %v612
    %v614 = vsub.f32 1.0, %v613
    %v615 = vmul.f32 %v612, %v614
    %v616 = vadd.f32 %v612, %v615
    %vm617 = vweird.f32 %v597
    %vm618 = vweird.f32 %v612
    %vm619 = vmor %vm617, %vm618
    %v620 = vsel %vm619, %v612, %v616
    %v621 = vand.u32 2147483647, %v597
    %vm622 = vcmp.eq.f32.partialorder %v621, 8.507059e+37
    %v623 = vand.u32 %v597, 2147483648
    %v624 = vor.u32 1.1754944e-38, %v623
    %v625 = vsel %vm622, %v624, %v620
    %v626 = vmul.f32 %v589, %v611
    %v627 = vmul.f32 %v591, %v625
    %628 = vrot.lane.b32.xlu0 %v226, 16
    %v629 = vpop.permute.xlu0 %628
    %630 = vrot.lane.b32.xlu0 %v227, 16
    %v631 = vpop.permute.xlu0 %630
    %v635 = vsel %vm244, %v626, 0
    %v638 = vsel %vm244, %v627, 0
    %640 = vmatpush.msra.mxu0 0.0
    %641 = vmatpush.msra.mxu0 0.0
    %642 = vmatpush.msra.mxu0 0.0
    %643 = vmatpush.msra.mxu0 0.0
    %644 = vmatpush.msra.mxu0 0.0
    %645 = vmatpush.msra.mxu0 0.0
    %646 = vmatpush.msra.mxu0 0.0
    %647 = vmatpush.msra.mxu0 0.0
    %648 = vmatpush.msra.mxu0 0.0
    %649 = vmatpush.msra.mxu0 0.0
    %650 = vmatpush.msra.mxu0 0.0
    %651 = vmatpush.msra.mxu0 0.0
    %652 = vmatpush.msra.mxu0 0.0
    %653 = vmatpush.msra.mxu0 0.0
    %654 = vmatpush.msra.mxu0 %v631
    %655 = vmatpush.msra.mxu0 %v629
    %656 = vmatmul.f32.gmra.mxu0 %v635
    %v657 = vpop.f32.mrf.mxu0
    %v658 = vadd.f32 0.0, %v657
    %659 = vmatmul.f32.gmra.mxu0 %v638
    %v660 = vpop.f32.mrf.mxu0
    %v661 = vadd.f32 0.0, %v660
    %662 = vdwg.mxu0
    %v664 = vsel %vm244, %v658, 0
    %v667 = vsel %vm244, %v661, 0
    %669 = vmatpush.msra.mxu0 0.0
    %670 = vmatpush.msra.mxu0 0.0
    %671 = vmatpush.msra.mxu0 0.0
    %672 = vmatpush.msra.mxu0 0.0
    %673 = vmatpush.msra.mxu0 0.0
    %674 = vmatpush.msra.mxu0 0.0
    %675 = vmatpush.msra.mxu0 0.0
    %676 = vmatpush.msra.mxu0 0.0
    %677 = vmatpush.msra.mxu0 0.0
    %678 = vmatpush.msra.mxu0 0.0
    %679 = vmatpush.msra.mxu0 0.0
    %680 = vmatpush.msra.mxu0 0.0
    %681 = vmatpush.msra.mxu0 0.0
    %682 = vmatpush.msra.mxu0 0.0
    %683 = vmatpush.msra.mxu0 %v235
    %684 = vmatpush.msra.mxu0 %v234
    %685 = vmatmul.f32.gmra.mxu0 %v664
    %v686 = vpop.f32.mrf.mxu0
    %v687 = vadd.f32 0.0, %v686
    %688 = vmatmul.f32.gmra.mxu0 %v667
    %v689 = vpop.f32.mrf.mxu0
    %v690 = vadd.f32 0.0, %v689
    %691 = vdwg.mxu0
    %v692 = vadd.f32 %v535, %v687
    %v693 = vadd.f32 %v536, %v690
    %694 = vrot.lane.b32.xlu0 %v226, 80
    %v695 = vpop.permute.xlu0 %694
    %696 = vrot.lane.b32.xlu0 %v227, 80
    %v697 = vpop.permute.xlu0 %696
    %v698 = vsel %vm244, %v695, 0
    %v700 = vsel %vm244, %v697, 0
    %702 = vmatpush.xpose.msra.mxu0 0.0
    %703 = vmatpush.xpose.msra.mxu0 0.0
    %704 = vmatpush.xpose.msra.mxu0 0.0
    %705 = vmatpush.xpose.msra.mxu0 0.0
    %706 = vmatpush.xpose.msra.mxu0 0.0
    %707 = vmatpush.xpose.msra.mxu0 0.0
    %708 = vmatpush.xpose.msra.mxu0 0.0
    %709 = vmatpush.xpose.msra.mxu0 0.0
    %710 = vmatpush.xpose.msra.mxu0 0.0
    %711 = vmatpush.xpose.msra.mxu0 0.0
    %712 = vmatpush.xpose.msra.mxu0 0.0
    %713 = vmatpush.xpose.msra.mxu0 0.0
    %714 = vmatpush.xpose.msra.mxu0 0.0
    %715 = vmatpush.xpose.msra.mxu0 0.0
    %716 = vmatpush.xpose.msra.mxu0 %v551
    %717 = vmatpush.xpose.msra.mxu0 %v549
    %718 = vmatmul.f32.gmra.mxu0 %v698
    %v719 = vpop.f32.mrf.mxu0
    %v720 = vadd.f32 0.0, %v719
    %721 = vmatmul.f32.gmra.mxu0 %v700
    %v722 = vpop.f32.mrf.mxu0
    %v723 = vadd.f32 0.0, %v722
    %724 = vdwg.mxu0
    %v725 = vmul.f32 %v720, 0.25
    %v726 = vmul.f32 %v723, 0.25
    %v727 = vadd.f32 %v725, %v228
    %v728 = vadd.f32 %v726, %v229
    %v729 = vsel %vm244, %v727, -inf
    %730 = vmax.xlane.f32.xlu0 %v729
    %v731 = vpop.xlane.xlu0 %730
    %v732 = vsel %vm244, %v728, -inf
    %733 = vmax.xlane.f32.xlu0 %v732
    %v734 = vpop.xlane.xlu0 %733
    %v735 = vsub.f32 %v727, %v731
    %v736 = vsub.f32 %v728, %v734
    %v737 = vmul.f32 %v735, 1.442695
    %v738 = vpow.pop %v737
    %v739 = vmul.f32 %v736, 1.442695
    %v740 = vpow.pop %v739
    %v741 = vsel %vm244, %v738, 0.0
    %742 = vadd.xlane.f32.xlu0 %v741
    %v743 = vpop.xlane.xlu0 %742
    %v744 = vsel %vm244, %v740, 0.0
    %745 = vadd.xlane.f32.xlu0 %v744
    %v746 = vpop.xlane.xlu0 %745
    %v747 = vrcp.pop %v743
    %v748 = vmul.f32 %v743, %v747
    %v749 = vsub.f32 1.0, %v748
    %v750 = vmul.f32 %v747, %v749
    %v751 = vadd.f32 %v747, %v750
    %vm752 = vweird.f32 %v743
    %vm753 = vweird.f32 %v747
    %vm754 = vmor %vm752, %vm753
    %v755 = vsel %vm754, %v747, %v751
    %v756 = vand.u32 2147483647, %v743
    %vm757 = vcmp.eq.f32.partialorder %v756, 8.507059e+37
    %v758 = vand.u32 %v743, 2147483648
    %v759 = vor.u32 1.1754944e-38, %v758
    %v760 = vsel %vm757, %v759, %v755
    %v761 = vrcp.pop %v746
    %v762 = vmul.f32 %v746, %v761
    %v763 = vsub.f32 1.0, %v762
    %v764 = vmul.f32 %v761, %v763
    %v765 = vadd.f32 %v761, %v764
    %vm766 = vweird.f32 %v746
    %vm767 = vweird.f32 %v761
    %vm768 = vmor %vm766, %vm767
    %v769 = vsel %vm768, %v761, %v765
    %v770 = vand.u32 2147483647, %v746
    %vm771 = vcmp.eq.f32.partialorder %v770, 8.507059e+37
    %v772 = vand.u32 %v746, 2147483648
    %v773 = vor.u32 1.1754944e-38, %v772
    %v774 = vsel %vm771, %v773, %v769
    %v775 = vmul.f32 %v738, %v760
    %v776 = vmul.f32 %v740, %v774
    %v778 = vsel %vm244, %v775, 0
    %v781 = vsel %vm244, %v776, 0
    %783 = vmatpush.msra.mxu0 0.0
    %784 = vmatpush.msra.mxu0 0.0
    %785 = vmatpush.msra.mxu0 0.0
    %786 = vmatpush.msra.mxu0 0.0
    %787 = vmatpush.msra.mxu0 0.0
    %788 = vmatpush.msra.mxu0 0.0
    %789 = vmatpush.msra.mxu0 0.0
    %790 = vmatpush.msra.mxu0 0.0
    %791 = vmatpush.msra.mxu0 0.0
    %792 = vmatpush.msra.mxu0 0.0
    %793 = vmatpush.msra.mxu0 0.0
    %794 = vmatpush.msra.mxu0 0.0
    %795 = vmatpush.msra.mxu0 0.0
    %796 = vmatpush.msra.mxu0 0.0
    %797 = vmatpush.msra.mxu0 %v631
    %798 = vmatpush.msra.mxu0 %v629
    %799 = vmatmul.f32.gmra.mxu0 %v778
    %v800 = vpop.f32.mrf.mxu0
    %v801 = vadd.f32 0.0, %v800
    %802 = vmatmul.f32.gmra.mxu0 %v781
    %v803 = vpop.f32.mrf.mxu0
    %v804 = vadd.f32 0.0, %v803
    %805 = vdwg.mxu0
    %v807 = vsel %vm244, %v801, 0
    %v810 = vsel %vm244, %v804, 0
    %812 = vmatpush.msra.mxu0 0.0
    %813 = vmatpush.msra.mxu0 0.0
    %814 = vmatpush.msra.mxu0 0.0
    %815 = vmatpush.msra.mxu0 0.0
    %816 = vmatpush.msra.mxu0 0.0
    %817 = vmatpush.msra.mxu0 0.0
    %818 = vmatpush.msra.mxu0 0.0
    %819 = vmatpush.msra.mxu0 0.0
    %820 = vmatpush.msra.mxu0 0.0
    %821 = vmatpush.msra.mxu0 0.0
    %822 = vmatpush.msra.mxu0 0.0
    %823 = vmatpush.msra.mxu0 0.0
    %824 = vmatpush.msra.mxu0 0.0
    %825 = vmatpush.msra.mxu0 0.0
    %826 = vmatpush.msra.mxu0 %v237
    %827 = vmatpush.msra.mxu0 %v236
    %828 = vmatmul.f32.gmra.mxu0 %v807
    %v829 = vpop.f32.mrf.mxu0
    %v830 = vadd.f32 0.0, %v829
    %831 = vmatmul.f32.gmra.mxu0 %v810
    %v832 = vpop.f32.mrf.mxu0
    %v833 = vadd.f32 0.0, %v832
    %834 = vdwg.mxu0
    %v835 = vadd.f32 %v692, %v830
    %v836 = vadd.f32 %v693, %v833
    %v837 = vld [vmem:[%s8] sm:$0x1]
    %v838 = vmul.f32 %v835, %v835
    %v839 = vmul.f32 %v836, %v836
    %v840 = vsel %vm122, %v838, 0.0
    %841 = vadd.xlane.f32.xlu0 %v840
    %v842 = vpop.xlane.xlu0 %841
    %v843 = vsel %vm122, %v839, 0.0
    %844 = vadd.xlane.f32.xlu0 %v843
    %v845 = vpop.xlane.xlu0 %844
    %v846 = vmul.f32 %v842, %v135
    %v847 = vmul.f32 %v845, %v135
    %v848 = vadd.f32 %v846, 1e-05
    %v849 = vadd.f32 %v847, 1e-05
    %v850 = vrsqrt.pop %v848
    %v851 = vmul.f32 %v850, %v848
    %v852 = vmul.f32 %v851, %v850
    %v853 = vmul.f32 0.5, %v852
    %v854 = vsub.f32 1.5, %v853
    %v855 = vmul.f32 %v850, %v854
    %vm856 = vweird.f32 %v848
    %vm857 = vweird.f32 %v850
    %vm858 = vmor %vm856, %vm857
    %v859 = vsel %vm858, %v850, %v855
    %v860 = vrsqrt.pop %v849
    %v861 = vmul.f32 %v860, %v849
    %v862 = vmul.f32 %v861, %v860
    %v863 = vmul.f32 0.5, %v862
    %v864 = vsub.f32 1.5, %v863
    %v865 = vmul.f32 %v860, %v864
    %vm866 = vweird.f32 %v849
    %vm867 = vweird.f32 %v860
    %vm868 = vmor %vm866, %vm867
    %v869 = vsel %vm868, %v860, %v865
    %v870 = vmul.f32 %v835, %v859
    %v871 = vmul.f32 %v836, %v869
    %v873 = vperm.slane %v837, 0
    %v875 = vmul.f32 %v873, %v870
    %v876 = vmul.f32 %v873, %v871
    %v877 = vld [vmem:[%s9] sm:$0xff]
    %v878 = vld [vmem:[%s9 + $0x8] sm:$0xff]
    %v879 = vld [vmem:[%s9 + $0x10] sm:$0xff]
    %v880 = vld [vmem:[%s9 + $0x18] sm:$0xff]
    %v881 = vld [vmem:[%s9 + $0x20] sm:$0xff]
    %v882 = vld [vmem:[%s9 + $0x28] sm:$0xff]
    %v883 = vld [vmem:[%s9 + $0x30] sm:$0xff]
    %v884 = vld [vmem:[%s9 + $0x38] sm:$0xff]
    %v885 = vld [vmem:[%s9 + $0x40] sm:$0xff]
    %v886 = vld [vmem:[%s9 + $0x48] sm:$0xff]
    %v887 = vld [vmem:[%s9 + $0x50] sm:$0xff]
    %v888 = vld [vmem:[%s9 + $0x58] sm:$0xff]
    %v889 = vld [vmem:[%s9 + $0x60] sm:$0xff]
    %v890 = vld [vmem:[%s9 + $0x68] sm:$0xff]
    %v891 = vld [vmem:[%s9 + $0x70] sm:$0xff]
    %v892 = vld [vmem:[%s9 + $0x78] sm:$0xff]
    %v893 = vld [vmem:[%s9 + $0x80] sm:$0xff]
    %v894 = vld [vmem:[%s9 + $0x88] sm:$0xff]
    %v895 = vld [vmem:[%s9 + $0x90] sm:$0xff]
    %v896 = vld [vmem:[%s9 + $0x98] sm:$0xff]
    %v897 = vld [vmem:[%s9 + $0xa0] sm:$0xff]
    %v898 = vld [vmem:[%s9 + $0xa8] sm:$0xff]
    %v899 = vld [vmem:[%s9 + $0xb0] sm:$0xff]
    %v900 = vld [vmem:[%s9 + $0xb8] sm:$0xff]
    %v902 = vsel %vm122, %v875, 0
    %v905 = vsel %vm122, %v876, 0
    %907 = vmatpush.msra.mxu0 0.0
    %908 = vmatpush.msra.mxu0 0.0
    %909 = vmatpush.msra.mxu0 0.0
    %910 = vmatpush.msra.mxu0 0.0
    %911 = vmatpush.msra.mxu0 0.0
    %912 = vmatpush.msra.mxu0 0.0
    %913 = vmatpush.msra.mxu0 0.0
    %914 = vmatpush.msra.mxu0 0.0
    %915 = vmatpush.msra.mxu0 %v898
    %916 = vmatpush.msra.mxu0 %v895
    %917 = vmatpush.msra.mxu0 %v892
    %918 = vmatpush.msra.mxu0 %v889
    %919 = vmatpush.msra.mxu0 %v886
    %920 = vmatpush.msra.mxu0 %v883
    %921 = vmatpush.msra.mxu0 %v880
    %922 = vmatpush.msra.mxu0 %v877
    %923 = vmatmul.f32.gmra.mxu0 %v902
    %v924 = vpop.f32.mrf.mxu0
    %v925 = vadd.f32 0.0, %v924
    %926 = vmatmul.f32.gmra.mxu0 %v905
    %v927 = vpop.f32.mrf.mxu0
    %v928 = vadd.f32 0.0, %v927
    %929 = vdwg.mxu0
    %930 = vmatpush.msra.mxu0 0.0
    %931 = vmatpush.msra.mxu0 0.0
    %932 = vmatpush.msra.mxu0 0.0
    %933 = vmatpush.msra.mxu0 0.0
    %934 = vmatpush.msra.mxu0 0.0
    %935 = vmatpush.msra.mxu0 0.0
    %936 = vmatpush.msra.mxu0 0.0
    %937 = vmatpush.msra.mxu0 0.0
    %938 = vmatpush.msra.mxu0 %v899
    %939 = vmatpush.msra.mxu0 %v896
    %940 = vmatpush.msra.mxu0 %v893
    %941 = vmatpush.msra.mxu0 %v890
    %942 = vmatpush.msra.mxu0 %v887
    %943 = vmatpush.msra.mxu0 %v884
    %944 = vmatpush.msra.mxu0 %v881
    %945 = vmatpush.msra.mxu0 %v878
    %946 = vmatmul.f32.gmra.mxu0 %v902
    %v947 = vpop.f32.mrf.mxu0
    %v948 = vadd.f32 0.0, %v947
    %949 = vmatmul.f32.gmra.mxu0 %v905
    %v950 = vpop.f32.mrf.mxu0
    %v951 = vadd.f32 0.0, %v950
    %952 = vdwg.mxu0
    %953 = vmatpush.msra.mxu0 0.0
    %954 = vmatpush.msra.mxu0 0.0
    %955 = vmatpush.msra.mxu0 0.0
    %956 = vmatpush.msra.mxu0 0.0
    %957 = vmatpush.msra.mxu0 0.0
    %958 = vmatpush.msra.mxu0 0.0
    %959 = vmatpush.msra.mxu0 0.0
    %960 = vmatpush.msra.mxu0 0.0
    %961 = vmatpush.msra.mxu0 %v900
    %962 = vmatpush.msra.mxu0 %v897
    %963 = vmatpush.msra.mxu0 %v894
    %964 = vmatpush.msra.mxu0 %v891
    %965 = vmatpush.msra.mxu0 %v888
    %966 = vmatpush.msra.mxu0 %v885
    %967 = vmatpush.msra.mxu0 %v882
    %968 = vmatpush.msra.mxu0 %v879
    %969 = vmatmul.f32.gmra.mxu0 %v902
    %v970 = vpop.f32.mrf.mxu0
    %v971 = vadd.f32 0.0, %v970
    %972 = vmatmul.f32.gmra.mxu0 %v905
    %v973 = vpop.f32.mrf.mxu0
    %v974 = vadd.f32 0.0, %v973
    %975 = vdwg.mxu0
    %v976 = vsub.f32 0.0, %v925
    %v977 = vsub.f32 0.0, %v948
    %v978 = vsub.f32 0.0, %v928
    %v979 = vsub.f32 0.0, %v951
    %v980 = vmul.f32 %v976, 1.442695
    %v981 = vpow.pop %v980
    %v982 = vmul.f32 %v977, 1.442695
    %v983 = vpow.pop %v982
    %v984 = vmul.f32 %v978, 1.442695
    %v985 = vpow.pop %v984
    %v986 = vmul.f32 %v979, 1.442695
    %v987 = vpow.pop %v986
    %v988 = vadd.f32 %v981, 1.0
    %v989 = vadd.f32 %v983, 1.0
    %v990 = vadd.f32 %v985, 1.0
    %v991 = vadd.f32 %v987, 1.0
    %v992 = vrcp.pop %v988
    %v993 = vmul.f32 %v988, %v992
    %v994 = vsub.f32 1.0, %v993
    %v995 = vmul.f32 %v992, %v994
    %v996 = vadd.f32 %v992, %v995
    %vm997 = vweird.f32 %v988
    %vm998 = vweird.f32 %v992
    %vm999 = vmor %vm997, %vm998
    %v1000 = vsel %vm999, %v992, %v996
    %v1001 = vand.u32 2147483647, %v988
    %vm1002 = vcmp.eq.f32.partialorder %v1001, 8.507059e+37
    %v1003 = vand.u32 %v988, 2147483648
    %v1004 = vor.u32 1.1754944e-38, %v1003
    %v1005 = vsel %vm1002, %v1004, %v1000
    %v1006 = vrcp.pop %v989
    %v1007 = vmul.f32 %v989, %v1006
    %v1008 = vsub.f32 1.0, %v1007
    %v1009 = vmul.f32 %v1006, %v1008
    %v1010 = vadd.f32 %v1006, %v1009
    %vm1011 = vweird.f32 %v989
    %vm1012 = vweird.f32 %v1006
    %vm1013 = vmor %vm1011, %vm1012
    %v1014 = vsel %vm1013, %v1006, %v1010
    %v1015 = vand.u32 2147483647, %v989
    %vm1016 = vcmp.eq.f32.partialorder %v1015, 8.507059e+37
    %v1017 = vand.u32 %v989, 2147483648
    %v1018 = vor.u32 1.1754944e-38, %v1017
    %v1019 = vsel %vm1016, %v1018, %v1014
    %v1020 = vrcp.pop %v990
    %v1021 = vmul.f32 %v990, %v1020
    %v1022 = vsub.f32 1.0, %v1021
    %v1023 = vmul.f32 %v1020, %v1022
    %v1024 = vadd.f32 %v1020, %v1023
    %vm1025 = vweird.f32 %v990
    %vm1026 = vweird.f32 %v1020
    %vm1027 = vmor %vm1025, %vm1026
    %v1028 = vsel %vm1027, %v1020, %v1024
    %v1029 = vand.u32 2147483647, %v990
    %vm1030 = vcmp.eq.f32.partialorder %v1029, 8.507059e+37
    %v1031 = vand.u32 %v990, 2147483648
    %v1032 = vor.u32 1.1754944e-38, %v1031
    %v1033 = vsel %vm1030, %v1032, %v1028
    %v1034 = vrcp.pop %v991
    %v1035 = vmul.f32 %v991, %v1034
    %v1036 = vsub.f32 1.0, %v1035
    %v1037 = vmul.f32 %v1034, %v1036
    %v1038 = vadd.f32 %v1034, %v1037
    %vm1039 = vweird.f32 %v991
    %vm1040 = vweird.f32 %v1034
    %vm1041 = vmor %vm1039, %vm1040
    %v1042 = vsel %vm1041, %v1034, %v1038
    %v1043 = vand.u32 2147483647, %v991
    %vm1044 = vcmp.eq.f32.partialorder %v1043, 8.507059e+37
    %v1045 = vand.u32 %v991, 2147483648
    %v1046 = vor.u32 1.1754944e-38, %v1045
    %v1047 = vsel %vm1044, %v1046, %v1042
    %v1048 = vmul.f32 %v925, %v1005
    %v1049 = vmul.f32 %v948, %v1019
    %v1050 = vmul.f32 %v928, %v1033
    %v1051 = vmul.f32 %v951, %v1047
    %1056 = vrot.lane.b32.xlu0 %v948, 64
    %v1057 = vpop.permute.xlu0 %1056
    %1058 = vrot.lane.b32.xlu0 %v971, 64
    %v1059 = vpop.permute.xlu0 %1058
    %1060 = vrot.lane.b32.xlu0 %v951, 64
    %v1061 = vpop.permute.xlu0 %1060
    %1062 = vrot.lane.b32.xlu0 %v974, 64
    %v1063 = vpop.permute.xlu0 %1062
    %v1064 = vsel %vm122, %v1057, %v1059
    %v1065 = vsel %vm122, %v1061, %v1063
    %v1070 = vmul.f32 %v1048, %v1064
    %v1071 = vmul.f32 %v1049, %v1059
    %v1072 = vmul.f32 %v1050, %v1065
    %v1073 = vmul.f32 %v1051, %v1063
    %v1074 = vld [vmem:[%s10] sm:$0xff]
    %v1075 = vld [vmem:[%s10 + $0x8] sm:$0xff]
    %v1076 = vld [vmem:[%s10 + $0x10] sm:$0xff]
    %v1077 = vld [vmem:[%s10 + $0x18] sm:$0xff]
    %v1078 = vld [vmem:[%s10 + $0x20] sm:$0xff]
    %v1079 = vld [vmem:[%s10 + $0x28] sm:$0xff]
    %v1080 = vld [vmem:[%s10 + $0x30] sm:$0xff]
    %v1081 = vld [vmem:[%s10 + $0x38] sm:$0xff]
    %v1082 = vld [vmem:[%s10 + $0x40] sm:$0xff]
    %v1083 = vld [vmem:[%s10 + $0x48] sm:$0xff]
    %v1084 = vld [vmem:[%s10 + $0x50] sm:$0xff]
    %v1085 = vld [vmem:[%s10 + $0x58] sm:$0xff]
    %v1086 = vld [vmem:[%s10 + $0x60] sm:$0xff]
    %v1087 = vld [vmem:[%s10 + $0x68] sm:$0xff]
    %v1088 = vld [vmem:[%s10 + $0x70] sm:$0xff]
    %v1089 = vld [vmem:[%s10 + $0x78] sm:$0xff]
    %v1090 = vld [vmem:[%s10 + $0x80] sm:$0xff]
    %v1091 = vld [vmem:[%s10 + $0x88] sm:$0xff]
    %v1092 = vld [vmem:[%s10 + $0x90] sm:$0xff]
    %v1093 = vld [vmem:[%s10 + $0x98] sm:$0xff]
    %v1094 = vld [vmem:[%s10 + $0xa0] sm:$0xff]
    %v1095 = vld [vmem:[%s10 + $0xa8] sm:$0xff]
    %v1096 = vld [vmem:[%s10 + $0xb0] sm:$0xff]
    %v1097 = vld [vmem:[%s10 + $0xb8] sm:$0xff]
    %v1099 = vsel %vm122, %v1071, 0
    %v1102 = vsel %vm122, %v1073, 0
    %1104 = vmatpush.msra.mxu0 %v1089
    %1105 = vmatpush.msra.mxu0 %v1088
    %1106 = vmatpush.msra.mxu0 %v1087
    %1107 = vmatpush.msra.mxu0 %v1086
    %1108 = vmatpush.msra.mxu0 %v1085
    %1109 = vmatpush.msra.mxu0 %v1084
    %1110 = vmatpush.msra.mxu0 %v1083
    %1111 = vmatpush.msra.mxu0 %v1082
    %1112 = vmatpush.msra.mxu0 %v1081
    %1113 = vmatpush.msra.mxu0 %v1080
    %1114 = vmatpush.msra.mxu0 %v1079
    %1115 = vmatpush.msra.mxu0 %v1078
    %1116 = vmatpush.msra.mxu0 %v1077
    %1117 = vmatpush.msra.mxu0 %v1076
    %1118 = vmatpush.msra.mxu0 %v1075
    %1119 = vmatpush.msra.mxu0 %v1074
    %1120 = vmatmul.f32.gmra.mxu0 %v1070
    %v1121 = vpop.f32.mrf.mxu0
    %v1122 = vadd.f32 0.0, %v1121
    %1123 = vmatmul.f32.gmra.mxu0 %v1072
    %v1124 = vpop.f32.mrf.mxu0
    %v1125 = vadd.f32 0.0, %v1124
    %1126 = vdwg.mxu0
    %1127 = vmatpush.msra.mxu0 0.0
    %1128 = vmatpush.msra.mxu0 0.0
    %1129 = vmatpush.msra.mxu0 0.0
    %1130 = vmatpush.msra.mxu0 0.0
    %1131 = vmatpush.msra.mxu0 0.0
    %1132 = vmatpush.msra.mxu0 0.0
    %1133 = vmatpush.msra.mxu0 0.0
    %1134 = vmatpush.msra.mxu0 0.0
    %1135 = vmatpush.msra.mxu0 %v1097
    %1136 = vmatpush.msra.mxu0 %v1096
    %1137 = vmatpush.msra.mxu0 %v1095
    %1138 = vmatpush.msra.mxu0 %v1094
    %1139 = vmatpush.msra.mxu0 %v1093
    %1140 = vmatpush.msra.mxu0 %v1092
    %1141 = vmatpush.msra.mxu0 %v1091
    %1142 = vmatpush.msra.mxu0 %v1090
    %1143 = vmatmul.f32.gmra.mxu0 %v1099
    %v1144 = vpop.f32.mrf.mxu0
    %v1145 = vadd.f32 %v1122, %v1144
    %1146 = vmatmul.f32.gmra.mxu0 %v1102
    %v1147 = vpop.f32.mrf.mxu0
    %v1148 = vadd.f32 %v1125, %v1147
    %1149 = vdwg.mxu0
    %v1150 = vadd.f32 %v835, %v1145
    %v1151 = vadd.f32 %v836, %v1148
    %1152 = vst.msk [vmem:[#allocation11] sm:$0xff] %vm122, %v1150
    %1153 = vst.msk [vmem:[#allocation11 + $0x8] sm:$0xff] %vm122, %v1151
    // Predicated region
    $region66: #{tpu_custom_call.1} parent=1 // pred_check
      _
    $region67: #{tpu_custom_call.1} parent=1 // pred_check_branch
      %1155 = sbr.rel (0) target = $region69
    $region68: #{tpu_custom_call.1} parent=1 // pred_region
      %1157 = vsyncadd [#allocation4], 0
      %s1158 = sshll.u32 [#allocation11], 4
      %s1159 = int_to_ptr.vmem [resolvable:$true] %s1158
      %s1160 = sshll.u32 %s11, 4
      %s1161 = int_to_ptr.hbm [resolvable:$true] %s1160
      %1166 = dma.vmem_to_hbm [thread:$0]  %s1159, 256, %s1161, [#allocation4], 128, 128, 8
    $region69: #{tpu_custom_call.1} parent=1 // pred_fallthru
      _
    // Predicated region
    $region70: #{tpu_custom_call.1} parent=1 // pred_check
      _
    $region71: #{tpu_custom_call.1} parent=1 // pred_check_branch
      %1168 = sbr.rel (0) target = $region73
    $region72: #{tpu_custom_call.1} parent=1 // pred_region
      %1170 = dma.done [#allocation4], 256
    $region73: #{tpu_custom_call.1} parent=1 // pred_fallthru
      _
    %1171 = vsyncpa [#allocation3], 1
    %1172 = vsyncpa [#allocation6], 1
    %1173 = vsyncpa [#allocation9], 1
    %1174 = vsyncpa [#allocation4], 1

</llo_original>
